<compile_context>
chip_gen: v6e
topology: v6e:2x2x1
jax: 0.10.0
libtpu: 0.0.40
codegen_flags: <defaults>
</compile_context>

<pallas_src>
import jax
import jax.numpy as jnp
from jax.experimental import pallas as pl
from jax.experimental.pallas import tpu as pltpu

EPS = 1e-5
NEG_SLOPE = 0.1  # nn.LeakyReLU(0.1)


def _vmem():
    return pl.BlockSpec(memory_space=pltpu.MemorySpace.VMEM)


# ----------------------------- fused kernel -----------------------------

def _make_fused_kernel(meta, batch):
    L = meta['seq_len']
    C0 = meta['input_dim']
    K = meta['kernel_size']
    blocks = meta['blocks']
    B = batch
    BL = B * L
    PAD = max((K - 1) * blk['dilation'] for blk in blocks)   # causal left pad (in scratch)

    def bn_lrelu(h, g, bta):
        # BatchNorm1d, training-mode batch stats over (B, L), biased var, eps=1e-5
        # (single pass: var = E[x^2] - mean^2), followed by LeakyReLU(0.1).
        inv_n = 1.0 / BL
        m = jnp.sum(h, axis=1, keepdims=True) * inv_n          # [C, 1]
        m2 = jnp.sum(h * h, axis=1, keepdims=True) * inv_n     # [C, 1]
        var = m2 - m * m
        hn = (h - m) * jax.lax.rsqrt(var + EPS) * g + bta      # [C, B*L]
        return jnp.where(hn >= 0, hn, NEG_SLOPE * hn)

    def kernel(*refs):
        it = iter(refs)
        x_ref, inw_ref, inb_ref = next(it), next(it), next(it)
        blk_refs = []
        for blk in blocks:
            names = ['g1', 'be1', 'w1', 'b1', 'g2', 'be2', 'w2', 'b2']
            if blk['has_down']:
                names += ['dw', 'db']
            blk_refs.append({nm: next(it) for nm in names})
        outw_ref, outb_ref = next(it), next(it)
        o_ref = next(it)            # output [B, output_dim, L]
        hbuf = next(it)             # VMEM scratch [C_rows, PAD + B*L]

        # Zero the scratch once; the left PAD columns stay zero forever => causal padding.
        hbuf[...] = jnp.zeros(hbuf.shape, jnp.float32)

        # ---- nn.Linear for the whole batch: x [B, latent] @ W [latent, C0*L] + b ----
        lin = jnp.dot(x_ref[...], inw_ref[...],
                      preferred_element_type=jnp.float32) + inb_ref[...]    # [B, C0*L]

        # ---- PyTorch .view(B, input_dim, seq_len): column j = c*L + l.  Scatter into
        #      the channels-major working layout [C, b*L + l] held in the scratch. ----
        for b in range(B):
            for c in range(C0):
                hbuf[c:c + 1, PAD + b * L: PAD + b * L + L] = lin[b:b + 1, c * L:(c + 1) * L]
        h = hbuf[0:C0, PAD:PAD + BL]                           # current activation [C, B*L]

        # Hoisted "time within sequence" index used by the causal / batch-boundary masks.
        t_in_seq = jax.lax.broadcasted_iota(jnp.int32, (1, BL), 1) % L
        mask_cache = {}

        def shifted_input(cin, s):
            # Column j of this slice holds activation column (j - s); columns with
            # (j mod L) < s would read across a batch boundary and are masked to the
            # causal zero padding instead.
            xs = hbuf[0:cin, PAD - s:PAD - s + BL]
            if s == 0:
                return xs
            if s not in mask_cache:
                mask_cache[s] = t_in_seq >= s
            return jnp.where(mask_cache[s], xs, 0.0)

        def causal_conv(cin, cout, w_ref, b_ref, d, residual):
            # Dilated causal Conv1d == PyTorch conv(padding=(K-1)*d) followed by Chomp1d.
            # Input is whatever was just stored at hbuf[:cin, PAD:PAD+B*L].
            acc = jnp.zeros((cout, BL), jnp.float32)
            for k in range(K):                                  # static taps -> MXU matmuls
                acc = acc + jnp.dot(w_ref[k], shifted_input(cin, (K - 1 - k) * d),
                                    preferred_element_type=jnp.float32)
            acc = acc + b_ref[...]                              # bias once on merged [cout, B*L]
            if residual is not None:
                acc = acc + residual
            return acc

        cin = C0
        for blk, r in zip(blocks, blk_refs):
            cout, d = blk['out_ch'], blk['dilation']
            # shortcut: identity or 1x1 downsample conv
            if blk['has_down']:
                res = jnp.dot(r['dw'][...], h, preferred_element_type=jnp.float32) + r['db'][...]
            else:
                res = h
            # residual branch: BN -> LReLU -> conv1 -> BN -> LReLU -> conv2 (+ shortcut)
            t = bn_lrelu(h, r['g1'][...], r['be1'][...])
            hbuf[0:cin, PAD:PAD + BL] = t
            t = causal_conv(cin, cout, r['w1'], r['b1'], d, None)
            t = bn_lrelu(t, r['g2'][...], r['be2'][...])
            hbuf[0:cout, PAD:PAD + BL] = t
            h = causal_conv(cout, cout, r['w2'], r['b2'], d, res)
            cin = cout

        # ---- output head: 1x1 Conv1d + Tanh, written directly as [B, output_dim, L] ----
        y = jnp.tanh(jnp.dot(outw_ref[...], h, preferred_element_type=jnp.float32)
                     + outb_ref[...])                           # [O, B*L]
        for b in range(B):
            o_ref[b] = y[:, b * L:(b + 1) * L]

    return kernel, PAD


# ----------------------------- wrapper -----------------------------

def generator_forward(params, x):
    meta = params['meta']
    B = x.shape[0]
    L, O, K = meta['seq_len'], meta['output_dim'], meta['kernel_size']

    args = [x, params['in_w'], params['in_b']]
    for bp, bm in zip(params['blocks'], meta['blocks']):
        args += [bp['g1'], bp['be1'], bp['w1'], bp['b1'],
                 bp['g2'], bp['be2'], bp['w2'], bp['b2']]
        if bm['has_down']:
            args += [bp['dw'], bp['db']]
    args += [params['out_w'], params['out_b']]

    kernel, pad = _make_fused_kernel(meta, B)

    c_max = max([meta['input_dim']] + [bm['out_ch'] for bm in meta['blocks']])
    c_rows = ((c_max + 7) // 8) * 8          # round scratch rows up to a sublane tile

    # Rough cost hint for the XLA scheduler around the fused custom call.
    flops = 2 * B * meta['latent_dim'] * meta['input_dim'] * L
    trans = O * B * L                         # tanh
    cin = meta['input_dim']
    for bm in meta['blocks']:
        cout = bm['out_ch']
        flops += 2 * K * cout * cin * B * L   # conv1
        flops += 2 * K * cout * cout * B * L  # conv2
        if bm['has_down']:
            flops += 2 * cout * cin * B * L
        trans += cin + cout                   # rsqrt per BN channel
        cin = cout
    flops += 2 * O * cin * B * L
    bytes_accessed = sum(int(a.size) * a.dtype.itemsize for a in args) + B * O * L * 4

    return pl.pallas_call(
        kernel,
        out_shape=jax.ShapeDtypeStruct((B, O, L), jnp.float32),
        in_specs=[_vmem()] * len(args),
        out_specs=_vmem(),
        scratch_shapes=[pltpu.VMEM((c_rows, pad + B * L), jnp.float32)],
        cost_estimate=pl.CostEstimate(flops=flops, transcendentals=trans,
                                      bytes_accessed=bytes_accessed),
    )(*args)


# ----------------------------- params -----------------------------

def init_generator_params(key, latent_dim, seq_len, input_dim, output_dim,
                          num_channels, kernel_size):
    keys = iter(jax.random.split(key, 128))
    params = {}
    # nn.Linear(latent_dim, seq_len*input_dim): stored as [in, out] so the kernel does x @ W.
    # Column j corresponds to PyTorch output feature j = c*seq_len + l (the .view order).
    params['in_w'] = 0.1 * jax.random.normal(next(keys), (latent_dim, seq_len * input_dim), jnp.float32)
    params['in_b'] = 0.1 * jax.random.normal(next(keys), (1, seq_len * input_dim), jnp.float32)

    blocks, meta_blocks = [], []
    in_ch = input_dim
    for i, out_ch in enumerate(num_channels):
        d = 2 ** i
        blk = dict(
            # conv weights stored [K, Cout, Cin]  (== PyTorch [Cout, Cin, K].transpose(2, 0, 1));
            # init_weights(): N(0, 0.01)
            w1=0.01 * jax.random.normal(next(keys), (kernel_size, out_ch, in_ch), jnp.float32),
            b1=0.1 * jax.random.normal(next(keys), (out_ch, 1), jnp.float32),
            w2=0.01 * jax.random.normal(next(keys), (kernel_size, out_ch, out_ch), jnp.float32),
            b2=0.1 * jax.random.normal(next(keys), (out_ch, 1), jnp.float32),
            # BatchNorm1d affine params (PyTorch default init: weight=1, bias=0)
            g1=jnp.ones((in_ch, 1), jnp.float32),
            be1=jnp.zeros((in_ch, 1), jnp.float32),
            g2=jnp.ones((out_ch, 1), jnp.float32),
            be2=jnp.zeros((out_ch, 1), jnp.float32),
        )
        has_down = in_ch != out_ch
        if has_down:   # 1x1 downsample conv on the shortcut, as in TemporalBlock
            blk['dw'] = 0.01 * jax.random.normal(next(keys), (out_ch, in_ch), jnp.float32)
            blk['db'] = 0.1 * jax.random.normal(next(keys), (out_ch, 1), jnp.float32)
        blocks.append(blk)
        meta_blocks.append(dict(in_ch=in_ch, out_ch=out_ch, dilation=d, has_down=has_down))
        in_ch = out_ch

    params['blocks'] = blocks
    params['out_w'] = 0.1 * jax.random.normal(next(keys), (output_dim, in_ch), jnp.float32)
    params['out_b'] = 0.1 * jax.random.normal(next(keys), (output_dim, 1), jnp.float32)
    params['meta'] = dict(latent_dim=latent_dim, seq_len=seq_len, input_dim=input_dim,
                          output_dim=output_dim, kernel_size=kernel_size, blocks=meta_blocks)
    return params
    # TODO(synk): n_classes > 0 (CategoricalConditionalBatchNorm1d) path not implemented
    #             (the spec instantiates the plain BatchNorm1d path, n_classes=0).


if __name__ == "__main__":
    latent_dim, seq_len, input_dim, output_dim = 8, 16, 4, 3
    num_channels = (8, 8)     # block 0: 4->8 (downsample shortcut), block 1: identity shortcut
    kernel_size = 3
    B = 2

    key = jax.random.PRNGKey(0)
    kx, kp = jax.random.split(key)
    x = jax.random.normal(kx, (B, latent_dim), jnp.float32)
    params = init_generator_params(kp, latent_dim, seq_len, input_dim, output_dim,
                                   num_channels, kernel_size)

    out = generator_forward(params, x)
    out = jax.block_until_ready(out)
    assert out.shape == (B, output_dim, seq_len)
    assert bool(jnp.all(jnp.isfinite(out)))
    print("KERNEL_OK")
</pallas_src>

<mosaic_0001>
module attributes {stable_mosaic.version = 11 : i64} {
  func.func @kernel(%arg0: memref<2x8xf32, #tpu.memory_space<vmem>>, %arg1: memref<8x64xf32, #tpu.memory_space<vmem>>, %arg2: memref<1x64xf32, #tpu.memory_space<vmem>>, %arg3: memref<4x1xf32, #tpu.memory_space<vmem>>, %arg4: memref<4x1xf32, #tpu.memory_space<vmem>>, %arg5: memref<3x8x4xf32, #tpu.memory_space<vmem>>, %arg6: memref<8x1xf32, #tpu.memory_space<vmem>>, %arg7: memref<8x1xf32, #tpu.memory_space<vmem>>, %arg8: memref<8x1xf32, #tpu.memory_space<vmem>>, %arg9: memref<3x8x8xf32, #tpu.memory_space<vmem>>, %arg10: memref<8x1xf32, #tpu.memory_space<vmem>>, %arg11: memref<8x4xf32, #tpu.memory_space<vmem>>, %arg12: memref<8x1xf32, #tpu.memory_space<vmem>>, %arg13: memref<8x1xf32, #tpu.memory_space<vmem>>, %arg14: memref<8x1xf32, #tpu.memory_space<vmem>>, %arg15: memref<3x8x8xf32, #tpu.memory_space<vmem>>, %arg16: memref<8x1xf32, #tpu.memory_space<vmem>>, %arg17: memref<8x1xf32, #tpu.memory_space<vmem>>, %arg18: memref<8x1xf32, #tpu.memory_space<vmem>>, %arg19: memref<3x8x8xf32, #tpu.memory_space<vmem>>, %arg20: memref<8x1xf32, #tpu.memory_space<vmem>>, %arg21: memref<3x8xf32, #tpu.memory_space<vmem>>, %arg22: memref<3x1xf32, #tpu.memory_space<vmem>>, %arg23: memref<2x3x16xf32, #tpu.memory_space<vmem>>, %arg24: memref<8x36xf32, #tpu.memory_space<vmem>>) attributes {dimension_semantics = [], scalar_prefetch = 0 : i64, scratch_operands = 1 : i64, tpu.core_type = #tpu.core_type<tc>} {
    %cst = arith.constant 0.000000e+00 : f32
    %0 = vector.broadcast %cst : f32 to vector<8x36xf32>
    %c0 = arith.constant 0 : index
    %c0_0 = arith.constant 0 : index
    %1 = vector.load %arg24[%c0, %c0_0] : memref<8x36xf32, #tpu.memory_space<vmem>>, vector<8x36xf32>
    tpu.vector_store %arg24[%c0, %c0_0], %0 {strides = array<i32>} : memref<8x36xf32, #tpu.memory_space<vmem>>, vector<8x36xf32>,
    %c0_1 = arith.constant 0 : index
    %c0_2 = arith.constant 0 : index
    %2 = vector.load %arg0[%c0_1, %c0_2] : memref<2x8xf32, #tpu.memory_space<vmem>>, vector<2x8xf32>
    %c0_3 = arith.constant 0 : index
    %c0_4 = arith.constant 0 : index
    %3 = vector.load %arg1[%c0_3, %c0_4] : memref<8x64xf32, #tpu.memory_space<vmem>>, vector<8x64xf32>
    %cst_5 = arith.constant dense<0.000000e+00> : vector<2x64xf32>
    %4 = tpu.matmul %2, %3, %cst_5 {dimension_numbers = #tpu.dot_dimension_numbers<[1], [0], [0], [1], [0, 0, 1, 1], [], []>} : vector<2x8xf32>, vector<8x64xf32>, vector<2x64xf32> -> vector<2x64xf32>
    %c0_6 = arith.constant 0 : index
    %c0_7 = arith.constant 0 : index
    %5 = vector.load %arg2[%c0_6, %c0_7] : memref<1x64xf32, #tpu.memory_space<vmem>>, vector<1x64xf32>
    %6 = vector.broadcast %5 : vector<1x64xf32> to vector<2x64xf32>
    %7 = arith.addf %4, %6 : vector<2x64xf32>
    %8 = vector.extract_strided_slice %7 {offsets = [0, 0], sizes = [1, 16], strides = [1, 1]} : vector<2x64xf32> to vector<1x16xf32>
    %c0_8 = arith.constant 0 : index
    %c4 = arith.constant 4 : index
    %9 = vector.load %arg24[%c0_8, %c4] : memref<8x36xf32, #tpu.memory_space<vmem>>, vector<1x16xf32>
    tpu.vector_store %arg24[%c0_8, %c4], %8 {strides = array<i32>} : memref<8x36xf32, #tpu.memory_space<vmem>>, vector<1x16xf32>,
    %10 = vector.extract_strided_slice %7 {offsets = [0, 16], sizes = [1, 16], strides = [1, 1]} : vector<2x64xf32> to vector<1x16xf32>
    %c1 = arith.constant 1 : index
    %c4_9 = arith.constant 4 : index
    %11 = vector.load %arg24[%c1, %c4_9] : memref<8x36xf32, #tpu.memory_space<vmem>>, vector<1x16xf32>
    tpu.vector_store %arg24[%c1, %c4_9], %10 {strides = array<i32>} : memref<8x36xf32, #tpu.memory_space<vmem>>, vector<1x16xf32>,
    %12 = vector.extract_strided_slice %7 {offsets = [0, 32], sizes = [1, 16], strides = [1, 1]} : vector<2x64xf32> to vector<1x16xf32>
    %c2 = arith.constant 2 : index
    %c4_10 = arith.constant 4 : index
    %13 = vector.load %arg24[%c2, %c4_10] : memref<8x36xf32, #tpu.memory_space<vmem>>, vector<1x16xf32>
    tpu.vector_store %arg24[%c2, %c4_10], %12 {strides = array<i32>} : memref<8x36xf32, #tpu.memory_space<vmem>>, vector<1x16xf32>,
    %14 = vector.extract_strided_slice %7 {offsets = [0, 48], sizes = [1, 16], strides = [1, 1]} : vector<2x64xf32> to vector<1x16xf32>
    %c3 = arith.constant 3 : index
    %c4_11 = arith.constant 4 : index
    %15 = vector.load %arg24[%c3, %c4_11] : memref<8x36xf32, #tpu.memory_space<vmem>>, vector<1x16xf32>
    tpu.vector_store %arg24[%c3, %c4_11], %14 {strides = array<i32>} : memref<8x36xf32, #tpu.memory_space<vmem>>, vector<1x16xf32>,
    %16 = vector.extract_strided_slice %7 {offsets = [1, 0], sizes = [1, 16], strides = [1, 1]} : vector<2x64xf32> to vector<1x16xf32>
    %c0_12 = arith.constant 0 : index
    %c20 = arith.constant 20 : index
    %17 = vector.load %arg24[%c0_12, %c20] : memref<8x36xf32, #tpu.memory_space<vmem>>, vector<1x16xf32>
    tpu.vector_store %arg24[%c0_12, %c20], %16 {strides = array<i32>} : memref<8x36xf32, #tpu.memory_space<vmem>>, vector<1x16xf32>,
    %18 = vector.extract_strided_slice %7 {offsets = [1, 16], sizes = [1, 16], strides = [1, 1]} : vector<2x64xf32> to vector<1x16xf32>
    %c1_13 = arith.constant 1 : index
    %c20_14 = arith.constant 20 : index
    %19 = vector.load %arg24[%c1_13, %c20_14] : memref<8x36xf32, #tpu.memory_space<vmem>>, vector<1x16xf32>
    tpu.vector_store %arg24[%c1_13, %c20_14], %18 {strides = array<i32>} : memref<8x36xf32, #tpu.memory_space<vmem>>, vector<1x16xf32>,
    %20 = vector.extract_strided_slice %7 {offsets = [1, 32], sizes = [1, 16], strides = [1, 1]} : vector<2x64xf32> to vector<1x16xf32>
    %c2_15 = arith.constant 2 : index
    %c20_16 = arith.constant 20 : index
    %21 = vector.load %arg24[%c2_15, %c20_16] : memref<8x36xf32, #tpu.memory_space<vmem>>, vector<1x16xf32>
    tpu.vector_store %arg24[%c2_15, %c20_16], %20 {strides = array<i32>} : memref<8x36xf32, #tpu.memory_space<vmem>>, vector<1x16xf32>,
    %22 = vector.extract_strided_slice %7 {offsets = [1, 48], sizes = [1, 16], strides = [1, 1]} : vector<2x64xf32> to vector<1x16xf32>
    %c3_17 = arith.constant 3 : index
    %c20_18 = arith.constant 20 : index
    %23 = vector.load %arg24[%c3_17, %c20_18] : memref<8x36xf32, #tpu.memory_space<vmem>>, vector<1x16xf32>
    tpu.vector_store %arg24[%c3_17, %c20_18], %22 {strides = array<i32>} : memref<8x36xf32, #tpu.memory_space<vmem>>, vector<1x16xf32>,
    %c0_19 = arith.constant 0 : index
    %c4_20 = arith.constant 4 : index
    %24 = vector.load %arg24[%c0_19, %c4_20] : memref<8x36xf32, #tpu.memory_space<vmem>>, vector<4x32xf32>
    %25 = tpu.iota {dimensions = array<i32: 1>} : vector<1x32xi32>
    %c16_i32 = arith.constant 16 : i32
    %c0_i32 = arith.constant 0 : i32
    %26 = arith.cmpi eq, %c16_i32, %c0_i32 : i32
    %c1_i32 = arith.constant 1 : i32
    %27 = arith.select %26, %c1_i32, %c16_i32 : i32
    %28 = vector.broadcast %27 : i32 to vector<1x32xi32>
    %29 = arith.remsi %25, %28 : vector<1x32xi32>
    %c0_i32_21 = arith.constant 0 : i32
    %30 = vector.broadcast %c0_i32_21 : i32 to vector<1x32xi32>
    %31 = arith.cmpi ne, %29, %30 : vector<1x32xi32>
    %c0_i32_22 = arith.constant 0 : i32
    %32 = vector.broadcast %c0_i32_22 : i32 to vector<1x32xi32>
    %33 = arith.cmpi slt, %29, %32 : vector<1x32xi32>
    %c0_i32_23 = arith.constant 0 : i32
    %34 = arith.cmpi slt, %27, %c0_i32_23 : i32
    %35 = vector.broadcast %34 : i1 to vector<1x32xi1>
    %36 = vector.broadcast %35 : vector<1x32xi1> to vector<1x32xi1>
    %37 = arith.xori %33, %36 : vector<1x32xi1>
    %38 = arith.andi %37, %31 : vector<1x32xi1>
    %39 = vector.broadcast %27 : i32 to vector<1x32xi32>
    %40 = arith.addi %29, %39 : vector<1x32xi32>
    %41 = arith.select %38, %40, %29 : vector<1x32xi1>, vector<1x32xi32>
    %c0_24 = arith.constant 0 : index
    %c0_25 = arith.constant 0 : index
    %42 = vector.load %arg11[%c0_24, %c0_25] : memref<8x4xf32, #tpu.memory_space<vmem>>, vector<8x4xf32>
    %cst_26 = arith.constant dense<0.000000e+00> : vector<8x32xf32>
    %43 = tpu.matmul %42, %24, %cst_26 {dimension_numbers = #tpu.dot_dimension_numbers<[1], [0], [0], [1], [0, 0, 1, 1], [], []>} : vector<8x4xf32>, vector<4x32xf32>, vector<8x32xf32> -> vector<8x32xf32>
    %c0_27 = arith.constant 0 : index
    %c0_28 = arith.constant 0 : index
    %44 = vector.load %arg12[%c0_27, %c0_28] : memref<8x1xf32, #tpu.memory_space<vmem>>, vector<8x1xf32>
    %45 = vector.broadcast %44 : vector<8x1xf32> to vector<8x32xf32>
    %46 = arith.addf %43, %45 : vector<8x32xf32>
    %c0_29 = arith.constant 0 : index
    %c0_30 = arith.constant 0 : index
    %47 = vector.load %arg3[%c0_29, %c0_30] : memref<4x1xf32, #tpu.memory_space<vmem>>, vector<4x1xf32>
    %c0_31 = arith.constant 0 : index
    %c0_32 = arith.constant 0 : index
    %48 = vector.load %arg4[%c0_31, %c0_32] : memref<4x1xf32, #tpu.memory_space<vmem>>, vector<4x1xf32>
    %cst_33 = arith.constant dense<0.000000e+00> : vector<4xf32>
    %49 = vector.multi_reduction <add>, %24, %cst_33 [1] : vector<4x32xf32> to vector<4xf32>
    %50 = vector.shape_cast %49 : vector<4xf32> to vector<4x1xf32>
    %cst_34 = arith.constant 3.125000e-02 : f32
    %51 = vector.broadcast %cst_34 : f32 to vector<4x1xf32>
    %52 = arith.mulf %50, %51 : vector<4x1xf32>
    %53 = arith.mulf %24, %24 : vector<4x32xf32>
    %cst_35 = arith.constant dense<0.000000e+00> : vector<4xf32>
    %54 = vector.multi_reduction <add>, %53, %cst_35 [1] : vector<4x32xf32> to vector<4xf32>
    %55 = vector.shape_cast %54 : vector<4xf32> to vector<4x1xf32>
    %cst_36 = arith.constant 3.125000e-02 : f32
    %56 = vector.broadcast %cst_36 : f32 to vector<4x1xf32>
    %57 = arith.mulf %55, %56 : vector<4x1xf32>
    %58 = arith.mulf %52, %52 : vector<4x1xf32>
    %59 = arith.subf %57, %58 : vector<4x1xf32>
    %60 = vector.broadcast %52 : vector<4x1xf32> to vector<4x32xf32>
    %61 = arith.subf %24, %60 : vector<4x32xf32>
    %cst_37 = arith.constant 9.99999974E-6 : f32
    %62 = vector.broadcast %cst_37 : f32 to vector<4x1xf32>
    %63 = arith.addf %59, %62 : vector<4x1xf32>
    %64 = math.rsqrt %63 : vector<4x1xf32>
    %65 = vector.broadcast %64 : vector<4x1xf32> to vector<4x32xf32>
    %66 = arith.mulf %61, %65 : vector<4x32xf32>
    %67 = vector.broadcast %47 : vector<4x1xf32> to vector<4x32xf32>
    %68 = arith.mulf %66, %67 : vector<4x32xf32>
    %69 = vector.broadcast %48 : vector<4x1xf32> to vector<4x32xf32>
    %70 = arith.addf %68, %69 : vector<4x32xf32>
    %cst_38 = arith.constant 0.000000e+00 : f32
    %71 = vector.broadcast %cst_38 : f32 to vector<4x32xf32>
    %72 = arith.cmpf oge, %70, %71 : vector<4x32xf32>
    %cst_39 = arith.constant 1.000000e-01 : f32
    %73 = vector.broadcast %cst_39 : f32 to vector<4x32xf32>
    %74 = arith.mulf %73, %70 : vector<4x32xf32>
    %75 = arith.select %72, %70, %74 : vector<4x32xi1>, vector<4x32xf32>
    %c0_40 = arith.constant 0 : index
    %c4_41 = arith.constant 4 : index
    %76 = vector.load %arg24[%c0_40, %c4_41] : memref<8x36xf32, #tpu.memory_space<vmem>>, vector<4x32xf32>
    tpu.vector_store %arg24[%c0_40, %c4_41], %75 {strides = array<i32>} : memref<8x36xf32, #tpu.memory_space<vmem>>, vector<4x32xf32>,
    %cst_42 = arith.constant 0.000000e+00 : f32
    %77 = vector.broadcast %cst_42 : f32 to vector<8x32xf32>
    %c0_43 = arith.constant 0 : index
    %c0_44 = arith.constant 0 : index
    %c0_45 = arith.constant 0 : index
    %78 = vector.load %arg5[%c0_43, %c0_44, %c0_45] : memref<3x8x4xf32, #tpu.memory_space<vmem>>, vector<1x8x4xf32>
    %79 = vector.shape_cast %78 : vector<1x8x4xf32> to vector<8x4xf32>
    %c0_46 = arith.constant 0 : index
    %c2_47 = arith.constant 2 : index
    %80 = vector.load %arg24[%c0_46, %c2_47] : memref<8x36xf32, #tpu.memory_space<vmem>>, vector<4x32xf32>
    %c2_i32 = arith.constant 2 : i32
    %81 = vector.broadcast %c2_i32 : i32 to vector<1x32xi32>
    %82 = arith.cmpi sge, %41, %81 : vector<1x32xi32>
    %cst_48 = arith.constant 0.000000e+00 : f32
    %83 = vector.shape_cast %82 : vector<1x32xi1> to vector<1x32xi1>
    %84 = vector.broadcast %83 : vector<1x32xi1> to vector<4x32xi1>
    %85 = vector.broadcast %cst_48 : f32 to vector<4x32xf32>
    %86 = arith.select %84, %80, %85 : vector<4x32xi1>, vector<4x32xf32>
    %cst_49 = arith.constant dense<0.000000e+00> : vector<8x32xf32>
    %87 = tpu.matmul %79, %86, %cst_49 {dimension_numbers = #tpu.dot_dimension_numbers<[1], [0], [0], [1], [0, 0, 1, 1], [], []>} : vector<8x4xf32>, vector<4x32xf32>, vector<8x32xf32> -> vector<8x32xf32>
    %88 = arith.addf %77, %87 : vector<8x32xf32>
    %c1_50 = arith.constant 1 : index
    %c0_51 = arith.constant 0 : index
    %c0_52 = arith.constant 0 : index
    %89 = vector.load %arg5[%c1_50, %c0_51, %c0_52] : memref<3x8x4xf32, #tpu.memory_space<vmem>>, vector<1x8x4xf32>
    %90 = vector.shape_cast %89 : vector<1x8x4xf32> to vector<8x4xf32>
    %c0_53 = arith.constant 0 : index
    %c3_54 = arith.constant 3 : index
    %91 = vector.load %arg24[%c0_53, %c3_54] : memref<8x36xf32, #tpu.memory_space<vmem>>, vector<4x32xf32>
    %c1_i32_55 = arith.constant 1 : i32
    %92 = vector.broadcast %c1_i32_55 : i32 to vector<1x32xi32>
    %93 = arith.cmpi sge, %41, %92 : vector<1x32xi32>
    %cst_56 = arith.constant 0.000000e+00 : f32
    %94 = vector.shape_cast %93 : vector<1x32xi1> to vector<1x32xi1>
    %95 = vector.broadcast %94 : vector<1x32xi1> to vector<4x32xi1>
    %96 = vector.broadcast %cst_56 : f32 to vector<4x32xf32>
    %97 = arith.select %95, %91, %96 : vector<4x32xi1>, vector<4x32xf32>
    %cst_57 = arith.constant dense<0.000000e+00> : vector<8x32xf32>
    %98 = tpu.matmul %90, %97, %cst_57 {dimension_numbers = #tpu.dot_dimension_numbers<[1], [0], [0], [1], [0, 0, 1, 1], [], []>} : vector<8x4xf32>, vector<4x32xf32>, vector<8x32xf32> -> vector<8x32xf32>
    %99 = arith.addf %88, %98 : vector<8x32xf32>
    %c2_58 = arith.constant 2 : index
    %c0_59 = arith.constant 0 : index
    %c0_60 = arith.constant 0 : index
    %100 = vector.load %arg5[%c2_58, %c0_59, %c0_60] : memref<3x8x4xf32, #tpu.memory_space<vmem>>, vector<1x8x4xf32>
    %101 = vector.shape_cast %100 : vector<1x8x4xf32> to vector<8x4xf32>
    %c0_61 = arith.constant 0 : index
    %c4_62 = arith.constant 4 : index
    %102 = vector.load %arg24[%c0_61, %c4_62] : memref<8x36xf32, #tpu.memory_space<vmem>>, vector<4x32xf32>
    %cst_63 = arith.constant dense<0.000000e+00> : vector<8x32xf32>
    %103 = tpu.matmul %101, %102, %cst_63 {dimension_numbers = #tpu.dot_dimension_numbers<[1], [0], [0], [1], [0, 0, 1, 1], [], []>} : vector<8x4xf32>, vector<4x32xf32>, vector<8x32xf32> -> vector<8x32xf32>
    %104 = arith.addf %99, %103 : vector<8x32xf32>
    %c0_64 = arith.constant 0 : index
    %c0_65 = arith.constant 0 : index
    %105 = vector.load %arg6[%c0_64, %c0_65] : memref<8x1xf32, #tpu.memory_space<vmem>>, vector<8x1xf32>
    %106 = vector.broadcast %105 : vector<8x1xf32> to vector<8x32xf32>
    %107 = arith.addf %104, %106 : vector<8x32xf32>
    %c0_66 = arith.constant 0 : index
    %c0_67 = arith.constant 0 : index
    %108 = vector.load %arg7[%c0_66, %c0_67] : memref<8x1xf32, #tpu.memory_space<vmem>>, vector<8x1xf32>
    %c0_68 = arith.constant 0 : index
    %c0_69 = arith.constant 0 : index
    %109 = vector.load %arg8[%c0_68, %c0_69] : memref<8x1xf32, #tpu.memory_space<vmem>>, vector<8x1xf32>
    %cst_70 = arith.constant dense<0.000000e+00> : vector<8xf32>
    %110 = vector.multi_reduction <add>, %107, %cst_70 [1] : vector<8x32xf32> to vector<8xf32>
    %111 = vector.shape_cast %110 : vector<8xf32> to vector<8x1xf32>
    %cst_71 = arith.constant 3.125000e-02 : f32
    %112 = vector.broadcast %cst_71 : f32 to vector<8x1xf32>
    %113 = arith.mulf %111, %112 : vector<8x1xf32>
    %114 = arith.mulf %107, %107 : vector<8x32xf32>
    %cst_72 = arith.constant dense<0.000000e+00> : vector<8xf32>
    %115 = vector.multi_reduction <add>, %114, %cst_72 [1] : vector<8x32xf32> to vector<8xf32>
    %116 = vector.shape_cast %115 : vector<8xf32> to vector<8x1xf32>
    %cst_73 = arith.constant 3.125000e-02 : f32
    %117 = vector.broadcast %cst_73 : f32 to vector<8x1xf32>
    %118 = arith.mulf %116, %117 : vector<8x1xf32>
    %119 = arith.mulf %113, %113 : vector<8x1xf32>
    %120 = arith.subf %118, %119 : vector<8x1xf32>
    %121 = vector.broadcast %113 : vector<8x1xf32> to vector<8x32xf32>
    %122 = arith.subf %107, %121 : vector<8x32xf32>
    %cst_74 = arith.constant 9.99999974E-6 : f32
    %123 = vector.broadcast %cst_74 : f32 to vector<8x1xf32>
    %124 = arith.addf %120, %123 : vector<8x1xf32>
    %125 = math.rsqrt %124 : vector<8x1xf32>
    %126 = vector.broadcast %125 : vector<8x1xf32> to vector<8x32xf32>
    %127 = arith.mulf %122, %126 : vector<8x32xf32>
    %128 = vector.broadcast %108 : vector<8x1xf32> to vector<8x32xf32>
    %129 = arith.mulf %127, %128 : vector<8x32xf32>
    %130 = vector.broadcast %109 : vector<8x1xf32> to vector<8x32xf32>
    %131 = arith.addf %129, %130 : vector<8x32xf32>
    %cst_75 = arith.constant 0.000000e+00 : f32
    %132 = vector.broadcast %cst_75 : f32 to vector<8x32xf32>
    %133 = arith.cmpf oge, %131, %132 : vector<8x32xf32>
    %cst_76 = arith.constant 1.000000e-01 : f32
    %134 = vector.broadcast %cst_76 : f32 to vector<8x32xf32>
    %135 = arith.mulf %134, %131 : vector<8x32xf32>
    %136 = arith.select %133, %131, %135 : vector<8x32xi1>, vector<8x32xf32>
    %c0_77 = arith.constant 0 : index
    %c4_78 = arith.constant 4 : index
    %137 = vector.load %arg24[%c0_77, %c4_78] : memref<8x36xf32, #tpu.memory_space<vmem>>, vector<8x32xf32>
    tpu.vector_store %arg24[%c0_77, %c4_78], %136 {strides = array<i32>} : memref<8x36xf32, #tpu.memory_space<vmem>>, vector<8x32xf32>,
    %cst_79 = arith.constant 0.000000e+00 : f32
    %138 = vector.broadcast %cst_79 : f32 to vector<8x32xf32>
    %c0_80 = arith.constant 0 : index
    %c0_81 = arith.constant 0 : index
    %c0_82 = arith.constant 0 : index
    %139 = vector.load %arg9[%c0_80, %c0_81, %c0_82] : memref<3x8x8xf32, #tpu.memory_space<vmem>>, vector<1x8x8xf32>
    %140 = vector.shape_cast %139 : vector<1x8x8xf32> to vector<8x8xf32>
    %c0_83 = arith.constant 0 : index
    %c2_84 = arith.constant 2 : index
    %141 = vector.load %arg24[%c0_83, %c2_84] : memref<8x36xf32, #tpu.memory_space<vmem>>, vector<8x32xf32>
    %cst_85 = arith.constant 0.000000e+00 : f32
    %142 = vector.shape_cast %82 : vector<1x32xi1> to vector<1x32xi1>
    %143 = vector.broadcast %142 : vector<1x32xi1> to vector<8x32xi1>
    %144 = vector.broadcast %cst_85 : f32 to vector<8x32xf32>
    %145 = arith.select %143, %141, %144 : vector<8x32xi1>, vector<8x32xf32>
    %cst_86 = arith.constant dense<0.000000e+00> : vector<8x32xf32>
    %146 = tpu.matmul %140, %145, %cst_86 {dimension_numbers = #tpu.dot_dimension_numbers<[1], [0], [0], [1], [0, 0, 1, 1], [], []>} : vector<8x8xf32>, vector<8x32xf32>, vector<8x32xf32> -> vector<8x32xf32>
    %147 = arith.addf %138, %146 : vector<8x32xf32>
    %c1_87 = arith.constant 1 : index
    %c0_88 = arith.constant 0 : index
    %c0_89 = arith.constant 0 : index
    %148 = vector.load %arg9[%c1_87, %c0_88, %c0_89] : memref<3x8x8xf32, #tpu.memory_space<vmem>>, vector<1x8x8xf32>
    %149 = vector.shape_cast %148 : vector<1x8x8xf32> to vector<8x8xf32>
    %c0_90 = arith.constant 0 : index
    %c3_91 = arith.constant 3 : index
    %150 = vector.load %arg24[%c0_90, %c3_91] : memref<8x36xf32, #tpu.memory_space<vmem>>, vector<8x32xf32>
    %cst_92 = arith.constant 0.000000e+00 : f32
    %151 = vector.shape_cast %93 : vector<1x32xi1> to vector<1x32xi1>
    %152 = vector.broadcast %151 : vector<1x32xi1> to vector<8x32xi1>
    %153 = vector.broadcast %cst_92 : f32 to vector<8x32xf32>
    %154 = arith.select %152, %150, %153 : vector<8x32xi1>, vector<8x32xf32>
    %cst_93 = arith.constant dense<0.000000e+00> : vector<8x32xf32>
    %155 = tpu.matmul %149, %154, %cst_93 {dimension_numbers = #tpu.dot_dimension_numbers<[1], [0], [0], [1], [0, 0, 1, 1], [], []>} : vector<8x8xf32>, vector<8x32xf32>, vector<8x32xf32> -> vector<8x32xf32>
    %156 = arith.addf %147, %155 : vector<8x32xf32>
    %c2_94 = arith.constant 2 : index
    %c0_95 = arith.constant 0 : index
    %c0_96 = arith.constant 0 : index
    %157 = vector.load %arg9[%c2_94, %c0_95, %c0_96] : memref<3x8x8xf32, #tpu.memory_space<vmem>>, vector<1x8x8xf32>
    %158 = vector.shape_cast %157 : vector<1x8x8xf32> to vector<8x8xf32>
    %c0_97 = arith.constant 0 : index
    %c4_98 = arith.constant 4 : index
    %159 = vector.load %arg24[%c0_97, %c4_98] : memref<8x36xf32, #tpu.memory_space<vmem>>, vector<8x32xf32>
    %cst_99 = arith.constant dense<0.000000e+00> : vector<8x32xf32>
    %160 = tpu.matmul %158, %159, %cst_99 {dimension_numbers = #tpu.dot_dimension_numbers<[1], [0], [0], [1], [0, 0, 1, 1], [], []>} : vector<8x8xf32>, vector<8x32xf32>, vector<8x32xf32> -> vector<8x32xf32>
    %161 = arith.addf %156, %160 : vector<8x32xf32>
    %c0_100 = arith.constant 0 : index
    %c0_101 = arith.constant 0 : index
    %162 = vector.load %arg10[%c0_100, %c0_101] : memref<8x1xf32, #tpu.memory_space<vmem>>, vector<8x1xf32>
    %163 = vector.broadcast %162 : vector<8x1xf32> to vector<8x32xf32>
    %164 = arith.addf %161, %163 : vector<8x32xf32>
    %165 = arith.addf %164, %46 : vector<8x32xf32>
    %c0_102 = arith.constant 0 : index
    %c0_103 = arith.constant 0 : index
    %166 = vector.load %arg13[%c0_102, %c0_103] : memref<8x1xf32, #tpu.memory_space<vmem>>, vector<8x1xf32>
    %c0_104 = arith.constant 0 : index
    %c0_105 = arith.constant 0 : index
    %167 = vector.load %arg14[%c0_104, %c0_105] : memref<8x1xf32, #tpu.memory_space<vmem>>, vector<8x1xf32>
    %cst_106 = arith.constant dense<0.000000e+00> : vector<8xf32>
    %168 = vector.multi_reduction <add>, %165, %cst_106 [1] : vector<8x32xf32> to vector<8xf32>
    %169 = vector.shape_cast %168 : vector<8xf32> to vector<8x1xf32>
    %cst_107 = arith.constant 3.125000e-02 : f32
    %170 = vector.broadcast %cst_107 : f32 to vector<8x1xf32>
    %171 = arith.mulf %169, %170 : vector<8x1xf32>
    %172 = arith.mulf %165, %165 : vector<8x32xf32>
    %cst_108 = arith.constant dense<0.000000e+00> : vector<8xf32>
    %173 = vector.multi_reduction <add>, %172, %cst_108 [1] : vector<8x32xf32> to vector<8xf32>
    %174 = vector.shape_cast %173 : vector<8xf32> to vector<8x1xf32>
    %cst_109 = arith.constant 3.125000e-02 : f32
    %175 = vector.broadcast %cst_109 : f32 to vector<8x1xf32>
    %176 = arith.mulf %174, %175 : vector<8x1xf32>
    %177 = arith.mulf %171, %171 : vector<8x1xf32>
    %178 = arith.subf %176, %177 : vector<8x1xf32>
    %179 = vector.broadcast %171 : vector<8x1xf32> to vector<8x32xf32>
    %180 = arith.subf %165, %179 : vector<8x32xf32>
    %cst_110 = arith.constant 9.99999974E-6 : f32
    %181 = vector.broadcast %cst_110 : f32 to vector<8x1xf32>
    %182 = arith.addf %178, %181 : vector<8x1xf32>
    %183 = math.rsqrt %182 : vector<8x1xf32>
    %184 = vector.broadcast %183 : vector<8x1xf32> to vector<8x32xf32>
    %185 = arith.mulf %180, %184 : vector<8x32xf32>
    %186 = vector.broadcast %166 : vector<8x1xf32> to vector<8x32xf32>
    %187 = arith.mulf %185, %186 : vector<8x32xf32>
    %188 = vector.broadcast %167 : vector<8x1xf32> to vector<8x32xf32>
    %189 = arith.addf %187, %188 : vector<8x32xf32>
    %cst_111 = arith.constant 0.000000e+00 : f32
    %190 = vector.broadcast %cst_111 : f32 to vector<8x32xf32>
    %191 = arith.cmpf oge, %189, %190 : vector<8x32xf32>
    %cst_112 = arith.constant 1.000000e-01 : f32
    %192 = vector.broadcast %cst_112 : f32 to vector<8x32xf32>
    %193 = arith.mulf %192, %189 : vector<8x32xf32>
    %194 = arith.select %191, %189, %193 : vector<8x32xi1>, vector<8x32xf32>
    %c0_113 = arith.constant 0 : index
    %c4_114 = arith.constant 4 : index
    %195 = vector.load %arg24[%c0_113, %c4_114] : memref<8x36xf32, #tpu.memory_space<vmem>>, vector<8x32xf32>
    tpu.vector_store %arg24[%c0_113, %c4_114], %194 {strides = array<i32>} : memref<8x36xf32, #tpu.memory_space<vmem>>, vector<8x32xf32>,
    %cst_115 = arith.constant 0.000000e+00 : f32
    %196 = vector.broadcast %cst_115 : f32 to vector<8x32xf32>
    %c0_116 = arith.constant 0 : index
    %c0_117 = arith.constant 0 : index
    %c0_118 = arith.constant 0 : index
    %197 = vector.load %arg15[%c0_116, %c0_117, %c0_118] : memref<3x8x8xf32, #tpu.memory_space<vmem>>, vector<1x8x8xf32>
    %198 = vector.shape_cast %197 : vector<1x8x8xf32> to vector<8x8xf32>
    %c0_119 = arith.constant 0 : index
    %c0_120 = arith.constant 0 : index
    %199 = vector.load %arg24[%c0_119, %c0_120] : memref<8x36xf32, #tpu.memory_space<vmem>>, vector<8x32xf32>
    %c4_i32 = arith.constant 4 : i32
    %200 = vector.broadcast %c4_i32 : i32 to vector<1x32xi32>
    %201 = arith.cmpi sge, %41, %200 : vector<1x32xi32>
    %cst_121 = arith.constant 0.000000e+00 : f32
    %202 = vector.shape_cast %201 : vector<1x32xi1> to vector<1x32xi1>
    %203 = vector.broadcast %202 : vector<1x32xi1> to vector<8x32xi1>
    %204 = vector.broadcast %cst_121 : f32 to vector<8x32xf32>
    %205 = arith.select %203, %199, %204 : vector<8x32xi1>, vector<8x32xf32>
    %cst_122 = arith.constant dense<0.000000e+00> : vector<8x32xf32>
    %206 = tpu.matmul %198, %205, %cst_122 {dimension_numbers = #tpu.dot_dimension_numbers<[1], [0], [0], [1], [0, 0, 1, 1], [], []>} : vector<8x8xf32>, vector<8x32xf32>, vector<8x32xf32> -> vector<8x32xf32>
    %207 = arith.addf %196, %206 : vector<8x32xf32>
    %c1_123 = arith.constant 1 : index
    %c0_124 = arith.constant 0 : index
    %c0_125 = arith.constant 0 : index
    %208 = vector.load %arg15[%c1_123, %c0_124, %c0_125] : memref<3x8x8xf32, #tpu.memory_space<vmem>>, vector<1x8x8xf32>
    %209 = vector.shape_cast %208 : vector<1x8x8xf32> to vector<8x8xf32>
    %c0_126 = arith.constant 0 : index
    %c2_127 = arith.constant 2 : index
    %210 = vector.load %arg24[%c0_126, %c2_127] : memref<8x36xf32, #tpu.memory_space<vmem>>, vector<8x32xf32>
    %cst_128 = arith.constant 0.000000e+00 : f32
    %211 = vector.shape_cast %82 : vector<1x32xi1> to vector<1x32xi1>
    %212 = vector.broadcast %211 : vector<1x32xi1> to vector<8x32xi1>
    %213 = vector.broadcast %cst_128 : f32 to vector<8x32xf32>
    %214 = arith.select %212, %210, %213 : vector<8x32xi1>, vector<8x32xf32>
    %cst_129 = arith.constant dense<0.000000e+00> : vector<8x32xf32>
    %215 = tpu.matmul %209, %214, %cst_129 {dimension_numbers = #tpu.dot_dimension_numbers<[1], [0], [0], [1], [0, 0, 1, 1], [], []>} : vector<8x8xf32>, vector<8x32xf32>, vector<8x32xf32> -> vector<8x32xf32>
    %216 = arith.addf %207, %215 : vector<8x32xf32>
    %c2_130 = arith.constant 2 : index
    %c0_131 = arith.constant 0 : index
    %c0_132 = arith.constant 0 : index
    %217 = vector.load %arg15[%c2_130, %c0_131, %c0_132] : memref<3x8x8xf32, #tpu.memory_space<vmem>>, vector<1x8x8xf32>
    %218 = vector.shape_cast %217 : vector<1x8x8xf32> to vector<8x8xf32>
    %c0_133 = arith.constant 0 : index
    %c4_134 = arith.constant 4 : index
    %219 = vector.load %arg24[%c0_133, %c4_134] : memref<8x36xf32, #tpu.memory_space<vmem>>, vector<8x32xf32>
    %cst_135 = arith.constant dense<0.000000e+00> : vector<8x32xf32>
    %220 = tpu.matmul %218, %219, %cst_135 {dimension_numbers = #tpu.dot_dimension_numbers<[1], [0], [0], [1], [0, 0, 1, 1], [], []>} : vector<8x8xf32>, vector<8x32xf32>, vector<8x32xf32> -> vector<8x32xf32>
    %221 = arith.addf %216, %220 : vector<8x32xf32>
    %c0_136 = arith.constant 0 : index
    %c0_137 = arith.constant 0 : index
    %222 = vector.load %arg16[%c0_136, %c0_137] : memref<8x1xf32, #tpu.memory_space<vmem>>, vector<8x1xf32>
    %223 = vector.broadcast %222 : vector<8x1xf32> to vector<8x32xf32>
    %224 = arith.addf %221, %223 : vector<8x32xf32>
    %c0_138 = arith.constant 0 : index
    %c0_139 = arith.constant 0 : index
    %225 = vector.load %arg17[%c0_138, %c0_139] : memref<8x1xf32, #tpu.memory_space<vmem>>, vector<8x1xf32>
    %c0_140 = arith.constant 0 : index
    %c0_141 = arith.constant 0 : index
    %226 = vector.load %arg18[%c0_140, %c0_141] : memref<8x1xf32, #tpu.memory_space<vmem>>, vector<8x1xf32>
    %cst_142 = arith.constant dense<0.000000e+00> : vector<8xf32>
    %227 = vector.multi_reduction <add>, %224, %cst_142 [1] : vector<8x32xf32> to vector<8xf32>
    %228 = vector.shape_cast %227 : vector<8xf32> to vector<8x1xf32>
    %cst_143 = arith.constant 3.125000e-02 : f32
    %229 = vector.broadcast %cst_143 : f32 to vector<8x1xf32>
    %230 = arith.mulf %228, %229 : vector<8x1xf32>
    %231 = arith.mulf %224, %224 : vector<8x32xf32>
    %cst_144 = arith.constant dense<0.000000e+00> : vector<8xf32>
    %232 = vector.multi_reduction <add>, %231, %cst_144 [1] : vector<8x32xf32> to vector<8xf32>
    %233 = vector.shape_cast %232 : vector<8xf32> to vector<8x1xf32>
    %cst_145 = arith.constant 3.125000e-02 : f32
    %234 = vector.broadcast %cst_145 : f32 to vector<8x1xf32>
    %235 = arith.mulf %233, %234 : vector<8x1xf32>
    %236 = arith.mulf %230, %230 : vector<8x1xf32>
    %237 = arith.subf %235, %236 : vector<8x1xf32>
    %238 = vector.broadcast %230 : vector<8x1xf32> to vector<8x32xf32>
    %239 = arith.subf %224, %238 : vector<8x32xf32>
    %cst_146 = arith.constant 9.99999974E-6 : f32
    %240 = vector.broadcast %cst_146 : f32 to vector<8x1xf32>
    %241 = arith.addf %237, %240 : vector<8x1xf32>
    %242 = math.rsqrt %241 : vector<8x1xf32>
    %243 = vector.broadcast %242 : vector<8x1xf32> to vector<8x32xf32>
    %244 = arith.mulf %239, %243 : vector<8x32xf32>
    %245 = vector.broadcast %225 : vector<8x1xf32> to vector<8x32xf32>
    %246 = arith.mulf %244, %245 : vector<8x32xf32>
    %247 = vector.broadcast %226 : vector<8x1xf32> to vector<8x32xf32>
    %248 = arith.addf %246, %247 : vector<8x32xf32>
    %cst_147 = arith.constant 0.000000e+00 : f32
    %249 = vector.broadcast %cst_147 : f32 to vector<8x32xf32>
    %250 = arith.cmpf oge, %248, %249 : vector<8x32xf32>
    %cst_148 = arith.constant 1.000000e-01 : f32
    %251 = vector.broadcast %cst_148 : f32 to vector<8x32xf32>
    %252 = arith.mulf %251, %248 : vector<8x32xf32>
    %253 = arith.select %250, %248, %252 : vector<8x32xi1>, vector<8x32xf32>
    %c0_149 = arith.constant 0 : index
    %c4_150 = arith.constant 4 : index
    %254 = vector.load %arg24[%c0_149, %c4_150] : memref<8x36xf32, #tpu.memory_space<vmem>>, vector<8x32xf32>
    tpu.vector_store %arg24[%c0_149, %c4_150], %253 {strides = array<i32>} : memref<8x36xf32, #tpu.memory_space<vmem>>, vector<8x32xf32>,
    %cst_151 = arith.constant 0.000000e+00 : f32
    %255 = vector.broadcast %cst_151 : f32 to vector<8x32xf32>
    %c0_152 = arith.constant 0 : index
    %c0_153 = arith.constant 0 : index
    %c0_154 = arith.constant 0 : index
    %256 = vector.load %arg19[%c0_152, %c0_153, %c0_154] : memref<3x8x8xf32, #tpu.memory_space<vmem>>, vector<1x8x8xf32>
    %257 = vector.shape_cast %256 : vector<1x8x8xf32> to vector<8x8xf32>
    %c0_155 = arith.constant 0 : index
    %c0_156 = arith.constant 0 : index
    %258 = vector.load %arg24[%c0_155, %c0_156] : memref<8x36xf32, #tpu.memory_space<vmem>>, vector<8x32xf32>
    %cst_157 = arith.constant 0.000000e+00 : f32
    %259 = vector.shape_cast %201 : vector<1x32xi1> to vector<1x32xi1>
    %260 = vector.broadcast %259 : vector<1x32xi1> to vector<8x32xi1>
    %261 = vector.broadcast %cst_157 : f32 to vector<8x32xf32>
    %262 = arith.select %260, %258, %261 : vector<8x32xi1>, vector<8x32xf32>
    %cst_158 = arith.constant dense<0.000000e+00> : vector<8x32xf32>
    %263 = tpu.matmul %257, %262, %cst_158 {dimension_numbers = #tpu.dot_dimension_numbers<[1], [0], [0], [1], [0, 0, 1, 1], [], []>} : vector<8x8xf32>, vector<8x32xf32>, vector<8x32xf32> -> vector<8x32xf32>
    %264 = arith.addf %255, %263 : vector<8x32xf32>
    %c1_159 = arith.constant 1 : index
    %c0_160 = arith.constant 0 : index
    %c0_161 = arith.constant 0 : index
    %265 = vector.load %arg19[%c1_159, %c0_160, %c0_161] : memref<3x8x8xf32, #tpu.memory_space<vmem>>, vector<1x8x8xf32>
    %266 = vector.shape_cast %265 : vector<1x8x8xf32> to vector<8x8xf32>
    %c0_162 = arith.constant 0 : index
    %c2_163 = arith.constant 2 : index
    %267 = vector.load %arg24[%c0_162, %c2_163] : memref<8x36xf32, #tpu.memory_space<vmem>>, vector<8x32xf32>
    %cst_164 = arith.constant 0.000000e+00 : f32
    %268 = vector.shape_cast %82 : vector<1x32xi1> to vector<1x32xi1>
    %269 = vector.broadcast %268 : vector<1x32xi1> to vector<8x32xi1>
    %270 = vector.broadcast %cst_164 : f32 to vector<8x32xf32>
    %271 = arith.select %269, %267, %270 : vector<8x32xi1>, vector<8x32xf32>
    %cst_165 = arith.constant dense<0.000000e+00> : vector<8x32xf32>
    %272 = tpu.matmul %266, %271, %cst_165 {dimension_numbers = #tpu.dot_dimension_numbers<[1], [0], [0], [1], [0, 0, 1, 1], [], []>} : vector<8x8xf32>, vector<8x32xf32>, vector<8x32xf32> -> vector<8x32xf32>
    %273 = arith.addf %264, %272 : vector<8x32xf32>
    %c2_166 = arith.constant 2 : index
    %c0_167 = arith.constant 0 : index
    %c0_168 = arith.constant 0 : index
    %274 = vector.load %arg19[%c2_166, %c0_167, %c0_168] : memref<3x8x8xf32, #tpu.memory_space<vmem>>, vector<1x8x8xf32>
    %275 = vector.shape_cast %274 : vector<1x8x8xf32> to vector<8x8xf32>
    %c0_169 = arith.constant 0 : index
    %c4_170 = arith.constant 4 : index
    %276 = vector.load %arg24[%c0_169, %c4_170] : memref<8x36xf32, #tpu.memory_space<vmem>>, vector<8x32xf32>
    %cst_171 = arith.constant dense<0.000000e+00> : vector<8x32xf32>
    %277 = tpu.matmul %275, %276, %cst_171 {dimension_numbers = #tpu.dot_dimension_numbers<[1], [0], [0], [1], [0, 0, 1, 1], [], []>} : vector<8x8xf32>, vector<8x32xf32>, vector<8x32xf32> -> vector<8x32xf32>
    %278 = arith.addf %273, %277 : vector<8x32xf32>
    %c0_172 = arith.constant 0 : index
    %c0_173 = arith.constant 0 : index
    %279 = vector.load %arg20[%c0_172, %c0_173] : memref<8x1xf32, #tpu.memory_space<vmem>>, vector<8x1xf32>
    %280 = vector.broadcast %279 : vector<8x1xf32> to vector<8x32xf32>
    %281 = arith.addf %278, %280 : vector<8x32xf32>
    %282 = arith.addf %281, %165 : vector<8x32xf32>
    %c0_174 = arith.constant 0 : index
    %c0_175 = arith.constant 0 : index
    %283 = vector.load %arg21[%c0_174, %c0_175] : memref<3x8xf32, #tpu.memory_space<vmem>>, vector<3x8xf32>
    %cst_176 = arith.constant dense<0.000000e+00> : vector<3x32xf32>
    %284 = tpu.matmul %283, %282, %cst_176 {dimension_numbers = #tpu.dot_dimension_numbers<[1], [0], [0], [1], [0, 0, 1, 1], [], []>} : vector<3x8xf32>, vector<8x32xf32>, vector<3x32xf32> -> vector<3x32xf32>
    %c0_177 = arith.constant 0 : index
    %c0_178 = arith.constant 0 : index
    %285 = vector.load %arg22[%c0_177, %c0_178] : memref<3x1xf32, #tpu.memory_space<vmem>>, vector<3x1xf32>
    %286 = vector.broadcast %285 : vector<3x1xf32> to vector<3x32xf32>
    %287 = arith.addf %284, %286 : vector<3x32xf32>
    %288 = math.tanh %287 : vector<3x32xf32>
    %289 = vector.extract_strided_slice %288 {offsets = [0, 0], sizes = [3, 16], strides = [1, 1]} : vector<3x32xf32> to vector<3x16xf32>
    %c0_179 = arith.constant 0 : index
    %c0_180 = arith.constant 0 : index
    %c0_181 = arith.constant 0 : index
    %290 = vector.load %arg23[%c0_179, %c0_180, %c0_181] : memref<2x3x16xf32, #tpu.memory_space<vmem>>, vector<1x3x16xf32>
    %291 = vector.shape_cast %290 : vector<1x3x16xf32> to vector<3x16xf32>
    %292 = vector.shape_cast %289 : vector<3x16xf32> to vector<1x3x16xf32>
    tpu.vector_store %arg23[%c0_179, %c0_180, %c0_181], %292 {strides = array<i32>} : memref<2x3x16xf32, #tpu.memory_space<vmem>>, vector<1x3x16xf32>,
    %293 = vector.extract_strided_slice %288 {offsets = [0, 16], sizes = [3, 16], strides = [1, 1]} : vector<3x32xf32> to vector<3x16xf32>
    %c1_182 = arith.constant 1 : index
    %c0_183 = arith.constant 0 : index
    %c0_184 = arith.constant 0 : index
    %294 = vector.load %arg23[%c1_182, %c0_183, %c0_184] : memref<2x3x16xf32, #tpu.memory_space<vmem>>, vector<1x3x16xf32>
    %295 = vector.shape_cast %294 : vector<1x3x16xf32> to vector<3x16xf32>
    %296 = vector.shape_cast %293 : vector<3x16xf32> to vector<1x3x16xf32>
    tpu.vector_store %arg23[%c1_182, %c0_183, %c0_184], %296 {strides = array<i32>} : memref<2x3x16xf32, #tpu.memory_space<vmem>>, vector<1x3x16xf32>,
    return
  }
}

</mosaic_0001>

<llo_original>
// kernel: tpu_custom_call.1
$region0: #{tpu_custom_call.1}
  #allocation0 [shape = 'u32[]', space=smem, size = 0x4, offset = 0x4, fixed_abs, tag = 'smem constant byte address 0x4 - core index']
  #allocation1 [shape = 'u32[144,128]{1,0:T(1,128)}', space=vmem, size = 0x12000, scoped, tag = 'internal scratch']
  #allocation2 [shape = 'f32[8,36]{1,0:T(8,128)}', space=vmem, size = 0x1000, scoped, tag = 'scratch operand']
  %s0 = inlined_call_operand.vmem [shape: f32[2,8], index: 0, kind: input, shape index: {}]
  %s1 = inlined_call_operand.vmem [shape: f32[8,64], index: 1, kind: input, shape index: {}]
  %s2 = inlined_call_operand.vmem [shape: f32[1,64], index: 2, kind: input, shape index: {}]
  %s3 = inlined_call_operand.vmem [shape: f32[4,1], index: 3, kind: input, shape index: {}]
  %s4 = inlined_call_operand.vmem [shape: f32[4,1], index: 4, kind: input, shape index: {}]
  %s5 = inlined_call_operand.vmem [shape: f32[3,8,4], index: 5, kind: input, shape index: {}]
  %s6 = inlined_call_operand.vmem [shape: f32[8,1], index: 6, kind: input, shape index: {}]
  %s7 = inlined_call_operand.vmem [shape: f32[8,1], index: 7, kind: input, shape index: {}]
  %s8 = inlined_call_operand.vmem [shape: f32[8,1], index: 8, kind: input, shape index: {}]
  %s9 = inlined_call_operand.vmem [shape: f32[3,8,8], index: 9, kind: input, shape index: {}]
  %s10 = inlined_call_operand.vmem [shape: f32[8,1], index: 10, kind: input, shape index: {}]
  %s11 = inlined_call_operand.vmem [shape: f32[8,4], index: 11, kind: input, shape index: {}]
  %s12 = inlined_call_operand.vmem [shape: f32[8,1], index: 12, kind: input, shape index: {}]
  %s13 = inlined_call_operand.vmem [shape: f32[8,1], index: 13, kind: input, shape index: {}]
  %s14 = inlined_call_operand.vmem [shape: f32[8,1], index: 14, kind: input, shape index: {}]
  %s15 = inlined_call_operand.vmem [shape: f32[3,8,8], index: 15, kind: input, shape index: {}]
  %s16 = inlined_call_operand.vmem [shape: f32[8,1], index: 16, kind: input, shape index: {}]
  %s17 = inlined_call_operand.vmem [shape: f32[8,1], index: 17, kind: input, shape index: {}]
  %s18 = inlined_call_operand.vmem [shape: f32[8,1], index: 18, kind: input, shape index: {}]
  %s19 = inlined_call_operand.vmem [shape: f32[3,8,8], index: 19, kind: input, shape index: {}]
  %s20 = inlined_call_operand.vmem [shape: f32[8,1], index: 20, kind: input, shape index: {}]
  %s21 = inlined_call_operand.vmem [shape: f32[3,8], index: 21, kind: input, shape index: {}]
  %s22 = inlined_call_operand.vmem [shape: f32[3,1], index: 22, kind: input, shape index: {}]
  %s23 = inlined_call_operand.vmem [shape: f32[2,3,16], index: 23, kind: output, shape index: {}]
  %s24 = sld [smem:[#allocation0]]
  $region102: #{tpu_custom_call.1} parent=0
    _
  %s26 = ssub.s32 1, %s24
  %s27 = scalar_select 0, %s26, %s24
  // Predicated region
  $region2: #{tpu_custom_call.1} parent=0 // pred_check
    _
  $region3: #{tpu_custom_call.1} parent=0 // pred_check_branch
    %29 = sbr.rel (0) target = $region5
  $region4: #{tpu_custom_call.1} parent=0 // pred_region
    _
  $region5: #{tpu_custom_call.1} parent=0 // pred_fallthru
    _
  // Predicated region
  $region6: #{tpu_custom_call.1} parent=0 // pred_check
    _
  $region7: #{tpu_custom_call.1} parent=0 // pred_check_branch
    %31 = sbr.rel (0) target = $region9
  $region8: #{tpu_custom_call.1} parent=0 // pred_region
    _
  $region9: #{tpu_custom_call.1} parent=0 // pred_fallthru
    _
  // Predicated region
  $region10: #{tpu_custom_call.1} parent=0 // pred_check
    _
  $region11: #{tpu_custom_call.1} parent=0 // pred_check_branch
    %33 = sbr.rel (0) target = $region13
  $region12: #{tpu_custom_call.1} parent=0 // pred_region
    _
  $region13: #{tpu_custom_call.1} parent=0 // pred_fallthru
    _
  // Predicated region
  $region14: #{tpu_custom_call.1} parent=0 // pred_check
    _
  $region15: #{tpu_custom_call.1} parent=0 // pred_check_branch
    %35 = sbr.rel (0) target = $region17
  $region16: #{tpu_custom_call.1} parent=0 // pred_region
    _
  $region17: #{tpu_custom_call.1} parent=0 // pred_fallthru
    _
  // Predicated region
  $region18: #{tpu_custom_call.1} parent=0 // pred_check
    _
  $region19: #{tpu_custom_call.1} parent=0 // pred_check_branch
    %37 = sbr.rel (0) target = $region21
  $region20: #{tpu_custom_call.1} parent=0 // pred_region
    _
  $region21: #{tpu_custom_call.1} parent=0 // pred_fallthru
    _
  // Predicated region
  $region22: #{tpu_custom_call.1} parent=0 // pred_check
    _
  $region23: #{tpu_custom_call.1} parent=0 // pred_check_branch
    %39 = sbr.rel (0) target = $region25
  $region24: #{tpu_custom_call.1} parent=0 // pred_region
    _
  $region25: #{tpu_custom_call.1} parent=0 // pred_fallthru
    _
  // Predicated region
  $region26: #{tpu_custom_call.1} parent=0 // pred_check
    _
  $region27: #{tpu_custom_call.1} parent=0 // pred_check_branch
    %41 = sbr.rel (0) target = $region29
  $region28: #{tpu_custom_call.1} parent=0 // pred_region
    _
  $region29: #{tpu_custom_call.1} parent=0 // pred_fallthru
    _
  // Predicated region
  $region30: #{tpu_custom_call.1} parent=0 // pred_check
    _
  $region31: #{tpu_custom_call.1} parent=0 // pred_check_branch
    %43 = sbr.rel (0) target = $region33
  $region32: #{tpu_custom_call.1} parent=0 // pred_region
    _
  $region33: #{tpu_custom_call.1} parent=0 // pred_fallthru
    _
  // Predicated region
  $region34: #{tpu_custom_call.1} parent=0 // pred_check
    _
  $region35: #{tpu_custom_call.1} parent=0 // pred_check_branch
    %45 = sbr.rel (0) target = $region37
  $region36: #{tpu_custom_call.1} parent=0 // pred_region
    _
  $region37: #{tpu_custom_call.1} parent=0 // pred_fallthru
    _
  // Predicated region
  $region38: #{tpu_custom_call.1} parent=0 // pred_check
    _
  $region39: #{tpu_custom_call.1} parent=0 // pred_check_branch
    %47 = sbr.rel (0) target = $region41
  $region40: #{tpu_custom_call.1} parent=0 // pred_region
    _
  $region41: #{tpu_custom_call.1} parent=0 // pred_fallthru
    _
  // Predicated region
  $region42: #{tpu_custom_call.1} parent=0 // pred_check
    _
  $region43: #{tpu_custom_call.1} parent=0 // pred_check_branch
    %49 = sbr.rel (0) target = $region45
  $region44: #{tpu_custom_call.1} parent=0 // pred_region
    _
  $region45: #{tpu_custom_call.1} parent=0 // pred_fallthru
    _
  // Predicated region
  $region46: #{tpu_custom_call.1} parent=0 // pred_check
    _
  $region47: #{tpu_custom_call.1} parent=0 // pred_check_branch
    %51 = sbr.rel (0) target = $region49
  $region48: #{tpu_custom_call.1} parent=0 // pred_region
    _
  $region49: #{tpu_custom_call.1} parent=0 // pred_fallthru
    _
  // Predicated region
  $region50: #{tpu_custom_call.1} parent=0 // pred_check
    _
  $region51: #{tpu_custom_call.1} parent=0 // pred_check_branch
    %53 = sbr.rel (0) target = $region53
  $region52: #{tpu_custom_call.1} parent=0 // pred_region
    _
  $region53: #{tpu_custom_call.1} parent=0 // pred_fallthru
    _
  // Predicated region
  $region54: #{tpu_custom_call.1} parent=0 // pred_check
    _
  $region55: #{tpu_custom_call.1} parent=0 // pred_check_branch
    %55 = sbr.rel (0) target = $region57
  $region56: #{tpu_custom_call.1} parent=0 // pred_region
    _
  $region57: #{tpu_custom_call.1} parent=0 // pred_fallthru
    _
  // Predicated region
  $region58: #{tpu_custom_call.1} parent=0 // pred_check
    _
  $region59: #{tpu_custom_call.1} parent=0 // pred_check_branch
    %57 = sbr.rel (0) target = $region61
  $region60: #{tpu_custom_call.1} parent=0 // pred_region
    _
  $region61: #{tpu_custom_call.1} parent=0 // pred_fallthru
    _
  // Predicated region
  $region62: #{tpu_custom_call.1} parent=0 // pred_check
    _
  $region63: #{tpu_custom_call.1} parent=0 // pred_check_branch
    %59 = sbr.rel (0) target = $region65
  $region64: #{tpu_custom_call.1} parent=0 // pred_region
    _
  $region65: #{tpu_custom_call.1} parent=0 // pred_fallthru
    _
  // Predicated region
  $region66: #{tpu_custom_call.1} parent=0 // pred_check
    _
  $region67: #{tpu_custom_call.1} parent=0 // pred_check_branch
    %61 = sbr.rel (0) target = $region69
  $region68: #{tpu_custom_call.1} parent=0 // pred_region
    _
  $region69: #{tpu_custom_call.1} parent=0 // pred_fallthru
    _
  // Predicated region
  $region70: #{tpu_custom_call.1} parent=0 // pred_check
    _
  $region71: #{tpu_custom_call.1} parent=0 // pred_check_branch
    %63 = sbr.rel (0) target = $region73
  $region72: #{tpu_custom_call.1} parent=0 // pred_region
    _
  $region73: #{tpu_custom_call.1} parent=0 // pred_fallthru
    _
  // Predicated region
  $region74: #{tpu_custom_call.1} parent=0 // pred_check
    _
  $region75: #{tpu_custom_call.1} parent=0 // pred_check_branch
    %65 = sbr.rel (0) target = $region77
  $region76: #{tpu_custom_call.1} parent=0 // pred_region
    _
  $region77: #{tpu_custom_call.1} parent=0 // pred_fallthru
    _
  // Predicated region
  $region78: #{tpu_custom_call.1} parent=0 // pred_check
    _
  $region79: #{tpu_custom_call.1} parent=0 // pred_check_branch
    %67 = sbr.rel (0) target = $region81
  $region80: #{tpu_custom_call.1} parent=0 // pred_region
    _
  $region81: #{tpu_custom_call.1} parent=0 // pred_fallthru
    _
  // Predicated region
  $region82: #{tpu_custom_call.1} parent=0 // pred_check
    _
  $region83: #{tpu_custom_call.1} parent=0 // pred_check_branch
    %69 = sbr.rel (0) target = $region85
  $region84: #{tpu_custom_call.1} parent=0 // pred_region
    _
  $region85: #{tpu_custom_call.1} parent=0 // pred_fallthru
    _
  // Predicated region
  $region86: #{tpu_custom_call.1} parent=0 // pred_check
    _
  $region87: #{tpu_custom_call.1} parent=0 // pred_check_branch
    %71 = sbr.rel (0) target = $region89
  $region88: #{tpu_custom_call.1} parent=0 // pred_region
    _
  $region89: #{tpu_custom_call.1} parent=0 // pred_fallthru
    _
  // Predicated region
  $region90: #{tpu_custom_call.1} parent=0 // pred_check
    _
  $region91: #{tpu_custom_call.1} parent=0 // pred_check_branch
    %73 = sbr.rel (0) target = $region93
  $region92: #{tpu_custom_call.1} parent=0 // pred_region
    _
  $region93: #{tpu_custom_call.1} parent=0 // pred_fallthru
    _
  %vm74 = vcmask 293888
  %75 = vst.msk [vmem:[#allocation2] sm:$0xff] %vm74, 0.0
  %v76 = vld [vmem:[%s0] sm:$0x3]
  %v77 = vld [vmem:[%s1] sm:$0xff]
  %v78 = vld [vmem:[%s2] sm:$0x1]
  %v80 = vlaneseq
  %v81 = vshrl.u32 %v80, 7
  %v82 = vsub.s32 0, %v81
  %v83 = vrot.slane %v78, %v82
  %vm85 = vcmask 64512
  %v87 = vsel %vm85, %v76, 0
  %89 = vmatprep.subr.mxu0 0.0
  %90 = vmatpush1.msra.mxu0 0.0
  %91 = vmatprep.subr.mxu0 0.0
  %92 = vmatpush1.msra.mxu0 0.0
  %93 = vmatprep.subr.mxu0 0.0
  %94 = vmatpush1.msra.mxu0 0.0
  %95 = vmatprep.subr.mxu0 0.0
  %96 = vmatpush1.msra.mxu0 0.0
  %97 = vmatprep.subr.mxu0 0.0
  %98 = vmatpush1.msra.mxu0 0.0
  %99 = vmatprep.subr.mxu0 0.0
  %100 = vmatpush1.msra.mxu0 0.0
  %101 = vmatprep.subr.mxu0 0.0
  %102 = vmatpush1.msra.mxu0 0.0
  %103 = vmatprep.subr.mxu0 0.0
  %104 = vmatpush1.msra.mxu0 0.0
  %105 = vmatprep.subr.mxu0 0.0
  %106 = vmatpush1.msra.mxu0 0.0
  %107 = vmatprep.subr.mxu0 0.0
  %108 = vmatpush1.msra.mxu0 0.0
  %109 = vmatprep.subr.mxu0 0.0
  %110 = vmatpush1.msra.mxu0 0.0
  %111 = vmatprep.subr.mxu0 0.0
  %112 = vmatpush1.msra.mxu0 0.0
  %113 = vmatprep.subr.mxu0 0.0
  %114 = vmatpush1.msra.mxu0 0.0
  %115 = vmatprep.subr.mxu0 0.0
  %116 = vmatpush1.msra.mxu0 0.0
  %117 = vmatprep.subr.mxu0 0.0
  %118 = vmatpush1.msra.mxu0 0.0
  %119 = vmatprep.subr.mxu0 0.0
  %120 = vmatpush1.msra.mxu0 %v77
  %121 = vmatprep.subr.mxu0 0.0
  %122 = vmatpush2.msra.mxu0 0.0
  %123 = vmatprep.subr.mxu0 0.0
  %124 = vmatpush2.msra.mxu0 0.0
  %125 = vmatprep.subr.mxu0 0.0
  %126 = vmatpush2.msra.mxu0 0.0
  %127 = vmatprep.subr.mxu0 0.0
  %128 = vmatpush2.msra.mxu0 0.0
  %129 = vmatprep.subr.mxu0 0.0
  %130 = vmatpush2.msra.mxu0 0.0
  %131 = vmatprep.subr.mxu0 0.0
  %132 = vmatpush2.msra.mxu0 0.0
  %133 = vmatprep.subr.mxu0 0.0
  %134 = vmatpush2.msra.mxu0 0.0
  %135 = vmatprep.subr.mxu0 0.0
  %136 = vmatpush2.msra.mxu0 0.0
  %137 = vmatprep.subr.mxu0 0.0
  %138 = vmatpush2.msra.mxu0 0.0
  %139 = vmatprep.subr.mxu0 0.0
  %140 = vmatpush2.msra.mxu0 0.0
  %141 = vmatprep.subr.mxu0 0.0
  %142 = vmatpush2.msra.mxu0 0.0
  %143 = vmatprep.subr.mxu0 0.0
  %144 = vmatpush2.msra.mxu0 0.0
  %145 = vmatprep.subr.mxu0 0.0
  %146 = vmatpush2.msra.mxu0 0.0
  %147 = vmatprep.subr.mxu0 0.0
  %148 = vmatpush2.msra.mxu0 0.0
  %149 = vmatprep.subr.mxu0 0.0
  %150 = vmatpush2.msra.mxu0 0.0
  %151 = vmatprep.subr.mxu0 0.0
  %152 = vmatpush2.msra.mxu0 0.0
  %153 = vmatprep.mubr.f32.mxu0 0.0
  %154 = vmatmul.mubr.f32.gmra.mxu0 %v87
  %v155 = vpop.f32.mrf.mxu0
  %v156 = vadd.f32 %v83, %v155
  %v157 = vpop.f32.mrf.mxu0
  %158 = vdwg.mxu0
  %160 = vrot.lane.b32.xlu0 %v156, 4
  %v161 = vpop.permute.xlu0 %160
  %vm163 = vcmask 155680
  %164 = vst.msk [vmem:[#allocation2] sm:$0x1] %vm163, %v161
  %165 = vrot.lane.b32.xlu0 %v156, 116
  %v166 = vpop.permute.xlu0 %165
  %168 = vst.msk [vmem:[#allocation2 + $0x1] sm:$0x1] %vm163, %v166
  %169 = vrot.lane.b32.xlu0 %v156, 100
  %v170 = vpop.permute.xlu0 %169
  %172 = vst.msk [vmem:[#allocation2 + $0x2] sm:$0x1] %vm163, %v170
  %173 = vrot.lane.b32.xlu0 %v156, 84
  %v174 = vpop.permute.xlu0 %173
  %176 = vst.msk [vmem:[#allocation2 + $0x3] sm:$0x1] %vm163, %v174
  %177 = vrot.lane.b32.xlu0 %v156, 20
  %v178 = vpop.permute.xlu0 %177
  %vm180 = vcmask 287905
  %181 = vst.msk [vmem:[#allocation2 - $0x1] sm:$0x2] %vm180, %v178
  %182 = vst.msk [vmem:[#allocation2] sm:$0x2] %vm180, %v161
  %183 = vst.msk [vmem:[#allocation2 + $0x1] sm:$0x2] %vm180, %v166
  %184 = vst.msk [vmem:[#allocation2 + $0x2] sm:$0x2] %vm180, %v170
  %v185 = vld [vmem:[#allocation2] sm:$0xf]
  %v186 = vlaneseq
  %v187 = vand.u32 %v186, 127
  %vm188 = vcmp.lt.s32.totalorder %v187, 0
  %v189 = vsub.s32 0, %v187
  %v190 = vsel %vm188, %v189, %v187
  %v191 = vshrl.u32 %v190, 4
  %v192 = vand.u32 %v190, 15
  %v193 = vsub.s32 0, %v192
  %v194 = vsel %vm188, %v193, %v192
  %vm195 = vcmp.ne.s32.totalorder %v194, 0
  %vm196 = vcmp.lt.s32.totalorder %v194, 0
  %vm197 = vmand %vm196, %vm195
  %v198 = vadd.s32 %v194, 16
  %v199 = vsel %vm197, %v198, %v194
  %v200 = vld [vmem:[%s11] sm:$0xff]
  %v201 = vld [vmem:[%s12] sm:$0xff]
  %203 = vset.pattern.permute.xlu0 0
  %204 = vperm.xlu0 %203, %v201
  %v205 = vpop.permute.xlu0 %204
  %208 = vrot.lane.b32.xlu0 %v185, 124
  %v209 = vpop.permute.xlu0 %208
  %vm210 = vcmask 31744
  %v212 = vsel %vm210, %v200, 0
  %vm214 = vcmask 1043456
  %v215 = vsel %vm214, %v209, 0
  %217 = vmatprep.subr.mxu0 0.0
  %218 = vmatpush1.msra.mxu0 0.0
  %219 = vmatprep.subr.mxu0 0.0
  %220 = vmatpush1.msra.mxu0 0.0
  %221 = vmatprep.subr.mxu0 0.0
  %222 = vmatpush1.msra.mxu0 0.0
  %223 = vmatprep.subr.mxu0 0.0
  %224 = vmatpush1.msra.mxu0 0.0
  %225 = vmatprep.subr.mxu0 0.0
  %226 = vmatpush1.msra.mxu0 0.0
  %227 = vmatprep.subr.mxu0 0.0
  %228 = vmatpush1.msra.mxu0 0.0
  %229 = vmatprep.subr.mxu0 0.0
  %230 = vmatpush1.msra.mxu0 0.0
  %231 = vmatprep.subr.mxu0 0.0
  %232 = vmatpush1.msra.mxu0 0.0
  %233 = vmatprep.subr.mxu0 0.0
  %234 = vmatpush1.msra.mxu0 0.0
  %235 = vmatprep.subr.mxu0 0.0
  %236 = vmatpush1.msra.mxu0 0.0
  %237 = vmatprep.subr.mxu0 0.0
  %238 = vmatpush1.msra.mxu0 0.0
  %239 = vmatprep.subr.mxu0 0.0
  %240 = vmatpush1.msra.mxu0 0.0
  %241 = vmatprep.subr.mxu0 0.0
  %242 = vmatpush1.msra.mxu0 0.0
  %243 = vmatprep.subr.mxu0 0.0
  %244 = vmatpush1.msra.mxu0 0.0
  %245 = vmatprep.subr.mxu0 0.0
  %246 = vmatpush1.msra.mxu0 0.0
  %247 = vmatprep.subr.mxu0 0.0
  %248 = vmatpush1.msra.mxu0 %v215
  %249 = vmatprep.subr.mxu0 0.0
  %250 = vmatpush2.msra.mxu0 0.0
  %251 = vmatprep.subr.mxu0 0.0
  %252 = vmatpush2.msra.mxu0 0.0
  %253 = vmatprep.subr.mxu0 0.0
  %254 = vmatpush2.msra.mxu0 0.0
  %255 = vmatprep.subr.mxu0 0.0
  %256 = vmatpush2.msra.mxu0 0.0
  %257 = vmatprep.subr.mxu0 0.0
  %258 = vmatpush2.msra.mxu0 0.0
  %259 = vmatprep.subr.mxu0 0.0
  %260 = vmatpush2.msra.mxu0 0.0
  %261 = vmatprep.subr.mxu0 0.0
  %262 = vmatpush2.msra.mxu0 0.0
  %263 = vmatprep.subr.mxu0 0.0
  %264 = vmatpush2.msra.mxu0 0.0
  %265 = vmatprep.subr.mxu0 0.0
  %266 = vmatpush2.msra.mxu0 0.0
  %267 = vmatprep.subr.mxu0 0.0
  %268 = vmatpush2.msra.mxu0 0.0
  %269 = vmatprep.subr.mxu0 0.0
  %270 = vmatpush2.msra.mxu0 0.0
  %271 = vmatprep.subr.mxu0 0.0
  %272 = vmatpush2.msra.mxu0 0.0
  %273 = vmatprep.subr.mxu0 0.0
  %274 = vmatpush2.msra.mxu0 0.0
  %275 = vmatprep.subr.mxu0 0.0
  %276 = vmatpush2.msra.mxu0 0.0
  %277 = vmatprep.subr.mxu0 0.0
  %278 = vmatpush2.msra.mxu0 0.0
  %279 = vmatprep.subr.mxu0 0.0
  %280 = vmatpush2.msra.mxu0 0.0
  %281 = vmatprep.mubr.f32.mxu0 0.0
  %282 = vmatmul.mubr.f32.gmra.mxu0 %v212
  %v283 = vpop.f32.mrf.mxu0
  %v284 = vadd.f32 %v205, %v283
  %v285 = vpop.f32.mrf.mxu0
  %286 = vdwg.mxu0
  %v287 = vld [vmem:[%s3] sm:$0xf]
  %v288 = vld [vmem:[%s4] sm:$0xf]
  %vm290 = vcmask 257024
  %v291 = vsel %vm290, %v209, 0.0
  %292 = vadd.xlane.f32.xlu0 %v291
  %v293 = vpop.xlane.xlu0 %292
  %v294 = vmul.f32 %v293, 0.03125
  %v295 = vmul.f32 %v185, %v185
  %297 = vrot.lane.b32.xlu0 %v295, 124
  %v298 = vpop.permute.xlu0 %297
  %v300 = vsel %vm290, %v298, 0.0
  %301 = vadd.xlane.f32.xlu0 %v300
  %v302 = vpop.xlane.xlu0 %301
  %v303 = vmul.f32 %v302, 0.03125
  %v304 = vmul.f32 %v294, %v294
  %v305 = vsub.f32 %v303, %v304
  %v306 = vsub.f32 %v185, %v294
  %v307 = vadd.f32 %v305, 1e-05
  %v308 = vrsqrt.pop %v307
  %v309 = vmul.f32 %v306, %v308
  %311 = vset.pattern.permute.xlu0 0
  %312 = vperm.xlu0 %311, %v287
  %v313 = vpop.permute.xlu0 %312
  %v315 = vmul.f32 %v309, %v313
  %317 = vset.pattern.permute.xlu0 0
  %318 = vperm.xlu0 %317, %v288
  %v319 = vpop.permute.xlu0 %318
  %v321 = vadd.f32 %v315, %v319
  %vm322 = vcmp.ge.f32.partialorder %v321, 0.0
  %v323 = vmul.f32 %v321, 0.1
  %v324 = vsel %vm322, %v321, %v323
  %vm325 = vcmask 289824
  %326 = vst.msk [vmem:[#allocation2] sm:$0xf] %vm325, %v324
  %v327 = vld [vmem:[%s5] sm:$0xff]
  %v328 = vld [vmem:[#allocation2] sm:$0xf]
  %vm329 = vcmp.ge.s32.totalorder %v199, 2
  %v330 = vsel %vm329, 1, 0
  %vm331 = vcmp.eq.s32.totalorder %v330, 1
  %333 = vrot.lane.b32.xlu0 %v328, 126
  %v334 = vpop.permute.xlu0 %333
  %v336 = vsel %vm331, %v334, 0.0
  %s337 = scalar_lea.vmem %s5, 8
  %v338 = vld [vmem:[%s337] sm:$0xff]
  %vm339 = vcmp.ge.s32.totalorder %v199, 1
  %v340 = vsel %vm339, 1, 0
  %vm341 = vcmp.eq.s32.totalorder %v340, 1
  %342 = vrot.lane.b32.xlu0 %v328, 125
  %v343 = vpop.permute.xlu0 %342
  %v345 = vsel %vm341, %v343, 0.0
  %v347 = vsel %vm210, %v338, 0
  %v350 = vsel %vm214, %v345, 0
  %352 = vmatprep.subr.mxu0 0.0
  %353 = vmatpush1.msra.mxu0 0.0
  %354 = vmatprep.subr.mxu0 0.0
  %355 = vmatpush1.msra.mxu0 0.0
  %356 = vmatprep.subr.mxu0 0.0
  %357 = vmatpush1.msra.mxu0 0.0
  %358 = vmatprep.subr.mxu0 0.0
  %359 = vmatpush1.msra.mxu0 0.0
  %360 = vmatprep.subr.mxu0 0.0
  %361 = vmatpush1.msra.mxu0 0.0
  %362 = vmatprep.subr.mxu0 0.0
  %363 = vmatpush1.msra.mxu0 0.0
  %364 = vmatprep.subr.mxu0 0.0
  %365 = vmatpush1.msra.mxu0 0.0
  %366 = vmatprep.subr.mxu0 0.0
  %367 = vmatpush1.msra.mxu0 0.0
  %368 = vmatprep.subr.mxu0 0.0
  %369 = vmatpush1.msra.mxu0 0.0
  %370 = vmatprep.subr.mxu0 0.0
  %371 = vmatpush1.msra.mxu0 0.0
  %372 = vmatprep.subr.mxu0 0.0
  %373 = vmatpush1.msra.mxu0 0.0
  %374 = vmatprep.subr.mxu0 0.0
  %375 = vmatpush1.msra.mxu0 0.0
  %376 = vmatprep.subr.mxu0 0.0
  %377 = vmatpush1.msra.mxu0 0.0
  %378 = vmatprep.subr.mxu0 0.0
  %379 = vmatpush1.msra.mxu0 0.0
  %380 = vmatprep.subr.mxu0 0.0
  %381 = vmatpush1.msra.mxu0 0.0
  %382 = vmatprep.subr.mxu0 0.0
  %383 = vmatpush1.msra.mxu0 %v350
  %384 = vmatprep.subr.mxu0 0.0
  %385 = vmatpush2.msra.mxu0 0.0
  %386 = vmatprep.subr.mxu0 0.0
  %387 = vmatpush2.msra.mxu0 0.0
  %388 = vmatprep.subr.mxu0 0.0
  %389 = vmatpush2.msra.mxu0 0.0
  %390 = vmatprep.subr.mxu0 0.0
  %391 = vmatpush2.msra.mxu0 0.0
  %392 = vmatprep.subr.mxu0 0.0
  %393 = vmatpush2.msra.mxu0 0.0
  %394 = vmatprep.subr.mxu0 0.0
  %395 = vmatpush2.msra.mxu0 0.0
  %396 = vmatprep.subr.mxu0 0.0
  %397 = vmatpush2.msra.mxu0 0.0
  %398 = vmatprep.subr.mxu0 0.0
  %399 = vmatpush2.msra.mxu0 0.0
  %400 = vmatprep.subr.mxu0 0.0
  %401 = vmatpush2.msra.mxu0 0.0
  %402 = vmatprep.subr.mxu0 0.0
  %403 = vmatpush2.msra.mxu0 0.0
  %404 = vmatprep.subr.mxu0 0.0
  %405 = vmatpush2.msra.mxu0 0.0
  %406 = vmatprep.subr.mxu0 0.0
  %407 = vmatpush2.msra.mxu0 0.0
  %408 = vmatprep.subr.mxu0 0.0
  %409 = vmatpush2.msra.mxu0 0.0
  %410 = vmatprep.subr.mxu0 0.0
  %411 = vmatpush2.msra.mxu0 0.0
  %412 = vmatprep.subr.mxu0 0.0
  %413 = vmatpush2.msra.mxu0 0.0
  %414 = vmatprep.subr.mxu0 0.0
  %415 = vmatpush2.msra.mxu0 0.0
  %416 = vmatprep.mubr.f32.mxu0 0.0
  %417 = vmatmul.mubr.f32.gmra.mxu0 %v347
  %v418 = vpop.f32.mrf.mxu0
  %v419 = vadd.f32 0.0, %v418
  %v420 = vpop.f32.mrf.mxu0
  %421 = vdwg.mxu0
  %v423 = vsel %vm210, %v327, 0
  %v426 = vsel %vm214, %v336, 0
  %428 = vmatprep.subr.mxu0 0.0
  %429 = vmatpush1.msra.mxu0 0.0
  %430 = vmatprep.subr.mxu0 0.0
  %431 = vmatpush1.msra.mxu0 0.0
  %432 = vmatprep.subr.mxu0 0.0
  %433 = vmatpush1.msra.mxu0 0.0
  %434 = vmatprep.subr.mxu0 0.0
  %435 = vmatpush1.msra.mxu0 0.0
  %436 = vmatprep.subr.mxu0 0.0
  %437 = vmatpush1.msra.mxu0 0.0
  %438 = vmatprep.subr.mxu0 0.0
  %439 = vmatpush1.msra.mxu0 0.0
  %440 = vmatprep.subr.mxu0 0.0
  %441 = vmatpush1.msra.mxu0 0.0
  %442 = vmatprep.subr.mxu0 0.0
  %443 = vmatpush1.msra.mxu0 0.0
  %444 = vmatprep.subr.mxu0 0.0
  %445 = vmatpush1.msra.mxu0 0.0
  %446 = vmatprep.subr.mxu0 0.0
  %447 = vmatpush1.msra.mxu0 0.0
  %448 = vmatprep.subr.mxu0 0.0
  %449 = vmatpush1.msra.mxu0 0.0
  %450 = vmatprep.subr.mxu0 0.0
  %451 = vmatpush1.msra.mxu0 0.0
  %452 = vmatprep.subr.mxu0 0.0
  %453 = vmatpush1.msra.mxu0 0.0
  %454 = vmatprep.subr.mxu0 0.0
  %455 = vmatpush1.msra.mxu0 0.0
  %456 = vmatprep.subr.mxu0 0.0
  %457 = vmatpush1.msra.mxu0 0.0
  %458 = vmatprep.subr.mxu0 0.0
  %459 = vmatpush1.msra.mxu0 %v426
  %460 = vmatprep.subr.mxu0 0.0
  %461 = vmatpush2.msra.mxu0 0.0
  %462 = vmatprep.subr.mxu0 0.0
  %463 = vmatpush2.msra.mxu0 0.0
  %464 = vmatprep.subr.mxu0 0.0
  %465 = vmatpush2.msra.mxu0 0.0
  %466 = vmatprep.subr.mxu0 0.0
  %467 = vmatpush2.msra.mxu0 0.0
  %468 = vmatprep.subr.mxu0 0.0
  %469 = vmatpush2.msra.mxu0 0.0
  %470 = vmatprep.subr.mxu0 0.0
  %471 = vmatpush2.msra.mxu0 0.0
  %472 = vmatprep.subr.mxu0 0.0
  %473 = vmatpush2.msra.mxu0 0.0
  %474 = vmatprep.subr.mxu0 0.0
  %475 = vmatpush2.msra.mxu0 0.0
  %476 = vmatprep.subr.mxu0 0.0
  %477 = vmatpush2.msra.mxu0 0.0
  %478 = vmatprep.subr.mxu0 0.0
  %479 = vmatpush2.msra.mxu0 0.0
  %480 = vmatprep.subr.mxu0 0.0
  %481 = vmatpush2.msra.mxu0 0.0
  %482 = vmatprep.subr.mxu0 0.0
  %483 = vmatpush2.msra.mxu0 0.0
  %484 = vmatprep.subr.mxu0 0.0
  %485 = vmatpush2.msra.mxu0 0.0
  %486 = vmatprep.subr.mxu0 0.0
  %487 = vmatpush2.msra.mxu0 0.0
  %488 = vmatprep.subr.mxu0 0.0
  %489 = vmatpush2.msra.mxu0 0.0
  %490 = vmatprep.subr.mxu0 0.0
  %491 = vmatpush2.msra.mxu0 0.0
  %492 = vmatprep.mubr.f32.mxu0 0.0
  %493 = vmatmul.mubr.f32.gmra.mxu0 %v423
  %v494 = vpop.f32.mrf.mxu0
  %v495 = vadd.f32 %v419, %v494
  %v496 = vpop.f32.mrf.mxu0
  %497 = vdwg.mxu0
  %s498 = scalar_lea.vmem %s5, 16
  %v499 = vld [vmem:[%s498] sm:$0xff]
  %500 = vrot.lane.b32.xlu0 %v328, 124
  %v501 = vpop.permute.xlu0 %500
  %v503 = vsel %vm210, %v499, 0
  %v505 = vsel %vm214, %v501, 0
  %507 = vmatprep.subr.mxu0 0.0
  %508 = vmatpush1.msra.mxu0 0.0
  %509 = vmatprep.subr.mxu0 0.0
  %510 = vmatpush1.msra.mxu0 0.0
  %511 = vmatprep.subr.mxu0 0.0
  %512 = vmatpush1.msra.mxu0 0.0
  %513 = vmatprep.subr.mxu0 0.0
  %514 = vmatpush1.msra.mxu0 0.0
  %515 = vmatprep.subr.mxu0 0.0
  %516 = vmatpush1.msra.mxu0 0.0
  %517 = vmatprep.subr.mxu0 0.0
  %518 = vmatpush1.msra.mxu0 0.0
  %519 = vmatprep.subr.mxu0 0.0
  %520 = vmatpush1.msra.mxu0 0.0
  %521 = vmatprep.subr.mxu0 0.0
  %522 = vmatpush1.msra.mxu0 0.0
  %523 = vmatprep.subr.mxu0 0.0
  %524 = vmatpush1.msra.mxu0 0.0
  %525 = vmatprep.subr.mxu0 0.0
  %526 = vmatpush1.msra.mxu0 0.0
  %527 = vmatprep.subr.mxu0 0.0
  %528 = vmatpush1.msra.mxu0 0.0
  %529 = vmatprep.subr.mxu0 0.0
  %530 = vmatpush1.msra.mxu0 0.0
  %531 = vmatprep.subr.mxu0 0.0
  %532 = vmatpush1.msra.mxu0 0.0
  %533 = vmatprep.subr.mxu0 0.0
  %534 = vmatpush1.msra.mxu0 0.0
  %535 = vmatprep.subr.mxu0 0.0
  %536 = vmatpush1.msra.mxu0 0.0
  %537 = vmatprep.subr.mxu0 0.0
  %538 = vmatpush1.msra.mxu0 %v505
  %539 = vmatprep.subr.mxu0 0.0
  %540 = vmatpush2.msra.mxu0 0.0
  %541 = vmatprep.subr.mxu0 0.0
  %542 = vmatpush2.msra.mxu0 0.0
  %543 = vmatprep.subr.mxu0 0.0
  %544 = vmatpush2.msra.mxu0 0.0
  %545 = vmatprep.subr.mxu0 0.0
  %546 = vmatpush2.msra.mxu0 0.0
  %547 = vmatprep.subr.mxu0 0.0
  %548 = vmatpush2.msra.mxu0 0.0
  %549 = vmatprep.subr.mxu0 0.0
  %550 = vmatpush2.msra.mxu0 0.0
  %551 = vmatprep.subr.mxu0 0.0
  %552 = vmatpush2.msra.mxu0 0.0
  %553 = vmatprep.subr.mxu0 0.0
  %554 = vmatpush2.msra.mxu0 0.0
  %555 = vmatprep.subr.mxu0 0.0
  %556 = vmatpush2.msra.mxu0 0.0
  %557 = vmatprep.subr.mxu0 0.0
  %558 = vmatpush2.msra.mxu0 0.0
  %559 = vmatprep.subr.mxu0 0.0
  %560 = vmatpush2.msra.mxu0 0.0
  %561 = vmatprep.subr.mxu0 0.0
  %562 = vmatpush2.msra.mxu0 0.0
  %563 = vmatprep.subr.mxu0 0.0
  %564 = vmatpush2.msra.mxu0 0.0
  %565 = vmatprep.subr.mxu0 0.0
  %566 = vmatpush2.msra.mxu0 0.0
  %567 = vmatprep.subr.mxu0 0.0
  %568 = vmatpush2.msra.mxu0 0.0
  %569 = vmatprep.subr.mxu0 0.0
  %570 = vmatpush2.msra.mxu0 0.0
  %571 = vmatprep.mubr.f32.mxu0 0.0
  %572 = vmatmul.mubr.f32.gmra.mxu0 %v503
  %v573 = vpop.f32.mrf.mxu0
  %v574 = vadd.f32 0.0, %v573
  %v575 = vpop.f32.mrf.mxu0
  %576 = vdwg.mxu0
  %v577 = vadd.f32 %v495, %v574
  %v578 = vld [vmem:[%s6] sm:$0xff]
  %580 = vset.pattern.permute.xlu0 0
  %581 = vperm.xlu0 %580, %v578
  %v582 = vpop.permute.xlu0 %581
  %v584 = vadd.f32 %v577, %v582
  %v585 = vld [vmem:[%s7] sm:$0xff]
  %v586 = vld [vmem:[%s8] sm:$0xff]
  %vm587 = vcmask 261120
  %v588 = vsel %vm587, %v584, 0.0
  %589 = vadd.xlane.f32.xlu0 %v588
  %v590 = vpop.xlane.xlu0 %589
  %v591 = vmul.f32 %v590, 0.03125
  %v592 = vmul.f32 %v584, %v584
  %v593 = vsel %vm587, %v592, 0.0
  %594 = vadd.xlane.f32.xlu0 %v593
  %v595 = vpop.xlane.xlu0 %594
  %v596 = vmul.f32 %v595, 0.03125
  %v597 = vmul.f32 %v591, %v591
  %v598 = vsub.f32 %v596, %v597
  %v599 = vsub.f32 %v584, %v591
  %v600 = vadd.f32 %v598, 1e-05
  %v601 = vrsqrt.pop %v600
  %v602 = vmul.f32 %v599, %v601
  %604 = vset.pattern.permute.xlu0 0
  %605 = vperm.xlu0 %604, %v585
  %v606 = vpop.permute.xlu0 %605
  %v608 = vmul.f32 %v602, %v606
  %610 = vset.pattern.permute.xlu0 0
  %611 = vperm.xlu0 %610, %v586
  %v612 = vpop.permute.xlu0 %611
  %v614 = vadd.f32 %v608, %v612
  %vm615 = vcmp.ge.f32.partialorder %v614, 0.0
  %v616 = vmul.f32 %v614, 0.1
  %v617 = vsel %vm615, %v614, %v616
  %619 = vrot.lane.b32.xlu0 %v617, 4
  %v620 = vpop.permute.xlu0 %619
  %vm622 = vcmask 293920
  %623 = vst.msk [vmem:[#allocation2] sm:$0xff] %vm622, %v620
  %v624 = vld [vmem:[%s9] sm:$0xff]
  %v625 = vld [vmem:[#allocation2] sm:$0xff]
  %627 = vrot.lane.b32.xlu0 %v625, 126
  %v628 = vpop.permute.xlu0 %627
  %v630 = vsel %vm331, %v628, 0.0
  %s631 = scalar_lea.vmem %s9, 8
  %v632 = vld [vmem:[%s631] sm:$0xff]
  %633 = vrot.lane.b32.xlu0 %v625, 125
  %v634 = vpop.permute.xlu0 %633
  %v636 = vsel %vm341, %v634, 0.0
  %v638 = vsel %vm85, %v632, 0
  %640 = vmatprep.subr.mxu0 0.0
  %641 = vmatpush1.msra.mxu0 0.0
  %642 = vmatprep.subr.mxu0 0.0
  %643 = vmatpush1.msra.mxu0 0.0
  %644 = vmatprep.subr.mxu0 0.0
  %645 = vmatpush1.msra.mxu0 0.0
  %646 = vmatprep.subr.mxu0 0.0
  %647 = vmatpush1.msra.mxu0 0.0
  %648 = vmatprep.subr.mxu0 0.0
  %649 = vmatpush1.msra.mxu0 0.0
  %650 = vmatprep.subr.mxu0 0.0
  %651 = vmatpush1.msra.mxu0 0.0
  %652 = vmatprep.subr.mxu0 0.0
  %653 = vmatpush1.msra.mxu0 0.0
  %654 = vmatprep.subr.mxu0 0.0
  %655 = vmatpush1.msra.mxu0 0.0
  %656 = vmatprep.subr.mxu0 0.0
  %657 = vmatpush1.msra.mxu0 0.0
  %658 = vmatprep.subr.mxu0 0.0
  %659 = vmatpush1.msra.mxu0 0.0
  %660 = vmatprep.subr.mxu0 0.0
  %661 = vmatpush1.msra.mxu0 0.0
  %662 = vmatprep.subr.mxu0 0.0
  %663 = vmatpush1.msra.mxu0 0.0
  %664 = vmatprep.subr.mxu0 0.0
  %665 = vmatpush1.msra.mxu0 0.0
  %666 = vmatprep.subr.mxu0 0.0
  %667 = vmatpush1.msra.mxu0 0.0
  %668 = vmatprep.subr.mxu0 0.0
  %669 = vmatpush1.msra.mxu0 0.0
  %670 = vmatprep.subr.mxu0 0.0
  %671 = vmatpush1.msra.mxu0 %v636
  %672 = vmatprep.subr.mxu0 0.0
  %673 = vmatpush2.msra.mxu0 0.0
  %674 = vmatprep.subr.mxu0 0.0
  %675 = vmatpush2.msra.mxu0 0.0
  %676 = vmatprep.subr.mxu0 0.0
  %677 = vmatpush2.msra.mxu0 0.0
  %678 = vmatprep.subr.mxu0 0.0
  %679 = vmatpush2.msra.mxu0 0.0
  %680 = vmatprep.subr.mxu0 0.0
  %681 = vmatpush2.msra.mxu0 0.0
  %682 = vmatprep.subr.mxu0 0.0
  %683 = vmatpush2.msra.mxu0 0.0
  %684 = vmatprep.subr.mxu0 0.0
  %685 = vmatpush2.msra.mxu0 0.0
  %686 = vmatprep.subr.mxu0 0.0
  %687 = vmatpush2.msra.mxu0 0.0
  %688 = vmatprep.subr.mxu0 0.0
  %689 = vmatpush2.msra.mxu0 0.0
  %690 = vmatprep.subr.mxu0 0.0
  %691 = vmatpush2.msra.mxu0 0.0
  %692 = vmatprep.subr.mxu0 0.0
  %693 = vmatpush2.msra.mxu0 0.0
  %694 = vmatprep.subr.mxu0 0.0
  %695 = vmatpush2.msra.mxu0 0.0
  %696 = vmatprep.subr.mxu0 0.0
  %697 = vmatpush2.msra.mxu0 0.0
  %698 = vmatprep.subr.mxu0 0.0
  %699 = vmatpush2.msra.mxu0 0.0
  %700 = vmatprep.subr.mxu0 0.0
  %701 = vmatpush2.msra.mxu0 0.0
  %702 = vmatprep.subr.mxu0 0.0
  %703 = vmatpush2.msra.mxu0 0.0
  %704 = vmatprep.mubr.f32.mxu0 0.0
  %705 = vmatmul.mubr.f32.gmra.mxu0 %v638
  %v706 = vpop.f32.mrf.mxu0
  %v707 = vadd.f32 0.0, %v706
  %v708 = vpop.f32.mrf.mxu0
  %709 = vdwg.mxu0
  %v711 = vsel %vm85, %v624, 0
  %713 = vmatprep.subr.mxu0 0.0
  %714 = vmatpush1.msra.mxu0 0.0
  %715 = vmatprep.subr.mxu0 0.0
  %716 = vmatpush1.msra.mxu0 0.0
  %717 = vmatprep.subr.mxu0 0.0
  %718 = vmatpush1.msra.mxu0 0.0
  %719 = vmatprep.subr.mxu0 0.0
  %720 = vmatpush1.msra.mxu0 0.0
  %721 = vmatprep.subr.mxu0 0.0
  %722 = vmatpush1.msra.mxu0 0.0
  %723 = vmatprep.subr.mxu0 0.0
  %724 = vmatpush1.msra.mxu0 0.0
  %725 = vmatprep.subr.mxu0 0.0
  %726 = vmatpush1.msra.mxu0 0.0
  %727 = vmatprep.subr.mxu0 0.0
  %728 = vmatpush1.msra.mxu0 0.0
  %729 = vmatprep.subr.mxu0 0.0
  %730 = vmatpush1.msra.mxu0 0.0
  %731 = vmatprep.subr.mxu0 0.0
  %732 = vmatpush1.msra.mxu0 0.0
  %733 = vmatprep.subr.mxu0 0.0
  %734 = vmatpush1.msra.mxu0 0.0
  %735 = vmatprep.subr.mxu0 0.0
  %736 = vmatpush1.msra.mxu0 0.0
  %737 = vmatprep.subr.mxu0 0.0
  %738 = vmatpush1.msra.mxu0 0.0
  %739 = vmatprep.subr.mxu0 0.0
  %740 = vmatpush1.msra.mxu0 0.0
  %741 = vmatprep.subr.mxu0 0.0
  %742 = vmatpush1.msra.mxu0 0.0
  %743 = vmatprep.subr.mxu0 0.0
  %744 = vmatpush1.msra.mxu0 %v630
  %745 = vmatprep.subr.mxu0 0.0
  %746 = vmatpush2.msra.mxu0 0.0
  %747 = vmatprep.subr.mxu0 0.0
  %748 = vmatpush2.msra.mxu0 0.0
  %749 = vmatprep.subr.mxu0 0.0
  %750 = vmatpush2.msra.mxu0 0.0
  %751 = vmatprep.subr.mxu0 0.0
  %752 = vmatpush2.msra.mxu0 0.0
  %753 = vmatprep.subr.mxu0 0.0
  %754 = vmatpush2.msra.mxu0 0.0
  %755 = vmatprep.subr.mxu0 0.0
  %756 = vmatpush2.msra.mxu0 0.0
  %757 = vmatprep.subr.mxu0 0.0
  %758 = vmatpush2.msra.mxu0 0.0
  %759 = vmatprep.subr.mxu0 0.0
  %760 = vmatpush2.msra.mxu0 0.0
  %761 = vmatprep.subr.mxu0 0.0
  %762 = vmatpush2.msra.mxu0 0.0
  %763 = vmatprep.subr.mxu0 0.0
  %764 = vmatpush2.msra.mxu0 0.0
  %765 = vmatprep.subr.mxu0 0.0
  %766 = vmatpush2.msra.mxu0 0.0
  %767 = vmatprep.subr.mxu0 0.0
  %768 = vmatpush2.msra.mxu0 0.0
  %769 = vmatprep.subr.mxu0 0.0
  %770 = vmatpush2.msra.mxu0 0.0
  %771 = vmatprep.subr.mxu0 0.0
  %772 = vmatpush2.msra.mxu0 0.0
  %773 = vmatprep.subr.mxu0 0.0
  %774 = vmatpush2.msra.mxu0 0.0
  %775 = vmatprep.subr.mxu0 0.0
  %776 = vmatpush2.msra.mxu0 0.0
  %777 = vmatprep.mubr.f32.mxu0 0.0
  %778 = vmatmul.mubr.f32.gmra.mxu0 %v711
  %v779 = vpop.f32.mrf.mxu0
  %v780 = vadd.f32 %v707, %v779
  %v781 = vpop.f32.mrf.mxu0
  %782 = vdwg.mxu0
  %s783 = scalar_lea.vmem %s9, 16
  %v784 = vld [vmem:[%s783] sm:$0xff]
  %785 = vrot.lane.b32.xlu0 %v625, 124
  %v786 = vpop.permute.xlu0 %785
  %v789 = vsel %vm85, %v784, 0
  %791 = vmatprep.subr.mxu0 0.0
  %792 = vmatpush1.msra.mxu0 0.0
  %793 = vmatprep.subr.mxu0 0.0
  %794 = vmatpush1.msra.mxu0 0.0
  %795 = vmatprep.subr.mxu0 0.0
  %796 = vmatpush1.msra.mxu0 0.0
  %797 = vmatprep.subr.mxu0 0.0
  %798 = vmatpush1.msra.mxu0 0.0
  %799 = vmatprep.subr.mxu0 0.0
  %800 = vmatpush1.msra.mxu0 0.0
  %801 = vmatprep.subr.mxu0 0.0
  %802 = vmatpush1.msra.mxu0 0.0
  %803 = vmatprep.subr.mxu0 0.0
  %804 = vmatpush1.msra.mxu0 0.0
  %805 = vmatprep.subr.mxu0 0.0
  %806 = vmatpush1.msra.mxu0 0.0
  %807 = vmatprep.subr.mxu0 0.0
  %808 = vmatpush1.msra.mxu0 0.0
  %809 = vmatprep.subr.mxu0 0.0
  %810 = vmatpush1.msra.mxu0 0.0
  %811 = vmatprep.subr.mxu0 0.0
  %812 = vmatpush1.msra.mxu0 0.0
  %813 = vmatprep.subr.mxu0 0.0
  %814 = vmatpush1.msra.mxu0 0.0
  %815 = vmatprep.subr.mxu0 0.0
  %816 = vmatpush1.msra.mxu0 0.0
  %817 = vmatprep.subr.mxu0 0.0
  %818 = vmatpush1.msra.mxu0 0.0
  %819 = vmatprep.subr.mxu0 0.0
  %820 = vmatpush1.msra.mxu0 0.0
  %821 = vmatprep.subr.mxu0 0.0
  %822 = vmatpush1.msra.mxu0 %v786
  %823 = vmatprep.subr.mxu0 0.0
  %824 = vmatpush2.msra.mxu0 0.0
  %825 = vmatprep.subr.mxu0 0.0
  %826 = vmatpush2.msra.mxu0 0.0
  %827 = vmatprep.subr.mxu0 0.0
  %828 = vmatpush2.msra.mxu0 0.0
  %829 = vmatprep.subr.mxu0 0.0
  %830 = vmatpush2.msra.mxu0 0.0
  %831 = vmatprep.subr.mxu0 0.0
  %832 = vmatpush2.msra.mxu0 0.0
  %833 = vmatprep.subr.mxu0 0.0
  %834 = vmatpush2.msra.mxu0 0.0
  %835 = vmatprep.subr.mxu0 0.0
  %836 = vmatpush2.msra.mxu0 0.0
  %837 = vmatprep.subr.mxu0 0.0
  %838 = vmatpush2.msra.mxu0 0.0
  %839 = vmatprep.subr.mxu0 0.0
  %840 = vmatpush2.msra.mxu0 0.0
  %841 = vmatprep.subr.mxu0 0.0
  %842 = vmatpush2.msra.mxu0 0.0
  %843 = vmatprep.subr.mxu0 0.0
  %844 = vmatpush2.msra.mxu0 0.0
  %845 = vmatprep.subr.mxu0 0.0
  %846 = vmatpush2.msra.mxu0 0.0
  %847 = vmatprep.subr.mxu0 0.0
  %848 = vmatpush2.msra.mxu0 0.0
  %849 = vmatprep.subr.mxu0 0.0
  %850 = vmatpush2.msra.mxu0 0.0
  %851 = vmatprep.subr.mxu0 0.0
  %852 = vmatpush2.msra.mxu0 0.0
  %853 = vmatprep.subr.mxu0 0.0
  %854 = vmatpush2.msra.mxu0 0.0
  %855 = vmatprep.mubr.f32.mxu0 0.0
  %856 = vmatmul.mubr.f32.gmra.mxu0 %v789
  %v857 = vpop.f32.mrf.mxu0
  %v858 = vadd.f32 0.0, %v857
  %v859 = vpop.f32.mrf.mxu0
  %860 = vdwg.mxu0
  %v861 = vadd.f32 %v780, %v858
  %v862 = vld [vmem:[%s10] sm:$0xff]
  %864 = vset.pattern.permute.xlu0 0
  %865 = vperm.xlu0 %864, %v862
  %v866 = vpop.permute.xlu0 %865
  %v868 = vadd.f32 %v861, %v866
  %v869 = vadd.f32 %v868, %v284
  %v870 = vld [vmem:[%s13] sm:$0xff]
  %v871 = vld [vmem:[%s14] sm:$0xff]
  %v872 = vsel %vm587, %v869, 0.0
  %873 = vadd.xlane.f32.xlu0 %v872
  %v874 = vpop.xlane.xlu0 %873
  %v875 = vmul.f32 %v874, 0.03125
  %v876 = vmul.f32 %v869, %v869
  %v877 = vsel %vm587, %v876, 0.0
  %878 = vadd.xlane.f32.xlu0 %v877
  %v879 = vpop.xlane.xlu0 %878
  %v880 = vmul.f32 %v879, 0.03125
  %v881 = vmul.f32 %v875, %v875
  %v882 = vsub.f32 %v880, %v881
  %v883 = vsub.f32 %v869, %v875
  %v884 = vadd.f32 %v882, 1e-05
  %v885 = vrsqrt.pop %v884
  %v886 = vmul.f32 %v883, %v885
  %888 = vset.pattern.permute.xlu0 0
  %889 = vperm.xlu0 %888, %v870
  %v890 = vpop.permute.xlu0 %889
  %v892 = vmul.f32 %v886, %v890
  %894 = vset.pattern.permute.xlu0 0
  %895 = vperm.xlu0 %894, %v871
  %v896 = vpop.permute.xlu0 %895
  %v898 = vadd.f32 %v892, %v896
  %vm899 = vcmp.ge.f32.partialorder %v898, 0.0
  %v900 = vmul.f32 %v898, 0.1
  %v901 = vsel %vm899, %v898, %v900
  %903 = vrot.lane.b32.xlu0 %v901, 4
  %v904 = vpop.permute.xlu0 %903
  %906 = vst.msk [vmem:[#allocation2] sm:$0xff] %vm622, %v904
  %v907 = vld [vmem:[%s15] sm:$0xff]
  %v908 = vld [vmem:[#allocation2] sm:$0xff]
  %vm909 = vcmp.ge.s32.totalorder %v199, 4
  %v910 = vsel %vm909, 1, 0
  %vm911 = vcmp.eq.s32.totalorder %v910, 1
  %v912 = vsel %vm911, %v908, 0.0
  %s913 = scalar_lea.vmem %s15, 8
  %v914 = vld [vmem:[%s913] sm:$0xff]
  %916 = vrot.lane.b32.xlu0 %v908, 126
  %v917 = vpop.permute.xlu0 %916
  %v919 = vsel %vm331, %v917, 0.0
  %v921 = vsel %vm85, %v914, 0
  %923 = vmatprep.subr.mxu0 0.0
  %924 = vmatpush1.msra.mxu0 0.0
  %925 = vmatprep.subr.mxu0 0.0
  %926 = vmatpush1.msra.mxu0 0.0
  %927 = vmatprep.subr.mxu0 0.0
  %928 = vmatpush1.msra.mxu0 0.0
  %929 = vmatprep.subr.mxu0 0.0
  %930 = vmatpush1.msra.mxu0 0.0
  %931 = vmatprep.subr.mxu0 0.0
  %932 = vmatpush1.msra.mxu0 0.0
  %933 = vmatprep.subr.mxu0 0.0
  %934 = vmatpush1.msra.mxu0 0.0
  %935 = vmatprep.subr.mxu0 0.0
  %936 = vmatpush1.msra.mxu0 0.0
  %937 = vmatprep.subr.mxu0 0.0
  %938 = vmatpush1.msra.mxu0 0.0
  %939 = vmatprep.subr.mxu0 0.0
  %940 = vmatpush1.msra.mxu0 0.0
  %941 = vmatprep.subr.mxu0 0.0
  %942 = vmatpush1.msra.mxu0 0.0
  %943 = vmatprep.subr.mxu0 0.0
  %944 = vmatpush1.msra.mxu0 0.0
  %945 = vmatprep.subr.mxu0 0.0
  %946 = vmatpush1.msra.mxu0 0.0
  %947 = vmatprep.subr.mxu0 0.0
  %948 = vmatpush1.msra.mxu0 0.0
  %949 = vmatprep.subr.mxu0 0.0
  %950 = vmatpush1.msra.mxu0 0.0
  %951 = vmatprep.subr.mxu0 0.0
  %952 = vmatpush1.msra.mxu0 0.0
  %953 = vmatprep.subr.mxu0 0.0
  %954 = vmatpush1.msra.mxu0 %v919
  %955 = vmatprep.subr.mxu0 0.0
  %956 = vmatpush2.msra.mxu0 0.0
  %957 = vmatprep.subr.mxu0 0.0
  %958 = vmatpush2.msra.mxu0 0.0
  %959 = vmatprep.subr.mxu0 0.0
  %960 = vmatpush2.msra.mxu0 0.0
  %961 = vmatprep.subr.mxu0 0.0
  %962 = vmatpush2.msra.mxu0 0.0
  %963 = vmatprep.subr.mxu0 0.0
  %964 = vmatpush2.msra.mxu0 0.0
  %965 = vmatprep.subr.mxu0 0.0
  %966 = vmatpush2.msra.mxu0 0.0
  %967 = vmatprep.subr.mxu0 0.0
  %968 = vmatpush2.msra.mxu0 0.0
  %969 = vmatprep.subr.mxu0 0.0
  %970 = vmatpush2.msra.mxu0 0.0
  %971 = vmatprep.subr.mxu0 0.0
  %972 = vmatpush2.msra.mxu0 0.0
  %973 = vmatprep.subr.mxu0 0.0
  %974 = vmatpush2.msra.mxu0 0.0
  %975 = vmatprep.subr.mxu0 0.0
  %976 = vmatpush2.msra.mxu0 0.0
  %977 = vmatprep.subr.mxu0 0.0
  %978 = vmatpush2.msra.mxu0 0.0
  %979 = vmatprep.subr.mxu0 0.0
  %980 = vmatpush2.msra.mxu0 0.0
  %981 = vmatprep.subr.mxu0 0.0
  %982 = vmatpush2.msra.mxu0 0.0
  %983 = vmatprep.subr.mxu0 0.0
  %984 = vmatpush2.msra.mxu0 0.0
  %985 = vmatprep.subr.mxu0 0.0
  %986 = vmatpush2.msra.mxu0 0.0
  %987 = vmatprep.mubr.f32.mxu0 0.0
  %988 = vmatmul.mubr.f32.gmra.mxu0 %v921
  %v989 = vpop.f32.mrf.mxu0
  %v990 = vadd.f32 0.0, %v989
  %v991 = vpop.f32.mrf.mxu0
  %992 = vdwg.mxu0
  %v994 = vsel %vm85, %v907, 0
  %996 = vmatprep.subr.mxu0 0.0
  %997 = vmatpush1.msra.mxu0 0.0
  %998 = vmatprep.subr.mxu0 0.0
  %999 = vmatpush1.msra.mxu0 0.0
  %1000 = vmatprep.subr.mxu0 0.0
  %1001 = vmatpush1.msra.mxu0 0.0
  %1002 = vmatprep.subr.mxu0 0.0
  %1003 = vmatpush1.msra.mxu0 0.0
  %1004 = vmatprep.subr.mxu0 0.0
  %1005 = vmatpush1.msra.mxu0 0.0
  %1006 = vmatprep.subr.mxu0 0.0
  %1007 = vmatpush1.msra.mxu0 0.0
  %1008 = vmatprep.subr.mxu0 0.0
  %1009 = vmatpush1.msra.mxu0 0.0
  %1010 = vmatprep.subr.mxu0 0.0
  %1011 = vmatpush1.msra.mxu0 0.0
  %1012 = vmatprep.subr.mxu0 0.0
  %1013 = vmatpush1.msra.mxu0 0.0
  %1014 = vmatprep.subr.mxu0 0.0
  %1015 = vmatpush1.msra.mxu0 0.0
  %1016 = vmatprep.subr.mxu0 0.0
  %1017 = vmatpush1.msra.mxu0 0.0
  %1018 = vmatprep.subr.mxu0 0.0
  %1019 = vmatpush1.msra.mxu0 0.0
  %1020 = vmatprep.subr.mxu0 0.0
  %1021 = vmatpush1.msra.mxu0 0.0
  %1022 = vmatprep.subr.mxu0 0.0
  %1023 = vmatpush1.msra.mxu0 0.0
  %1024 = vmatprep.subr.mxu0 0.0
  %1025 = vmatpush1.msra.mxu0 0.0
  %1026 = vmatprep.subr.mxu0 0.0
  %1027 = vmatpush1.msra.mxu0 %v912
  %1028 = vmatprep.subr.mxu0 0.0
  %1029 = vmatpush2.msra.mxu0 0.0
  %1030 = vmatprep.subr.mxu0 0.0
  %1031 = vmatpush2.msra.mxu0 0.0
  %1032 = vmatprep.subr.mxu0 0.0
  %1033 = vmatpush2.msra.mxu0 0.0
  %1034 = vmatprep.subr.mxu0 0.0
  %1035 = vmatpush2.msra.mxu0 0.0
  %1036 = vmatprep.subr.mxu0 0.0
  %1037 = vmatpush2.msra.mxu0 0.0
  %1038 = vmatprep.subr.mxu0 0.0
  %1039 = vmatpush2.msra.mxu0 0.0
  %1040 = vmatprep.subr.mxu0 0.0
  %1041 = vmatpush2.msra.mxu0 0.0
  %1042 = vmatprep.subr.mxu0 0.0
  %1043 = vmatpush2.msra.mxu0 0.0
  %1044 = vmatprep.subr.mxu0 0.0
  %1045 = vmatpush2.msra.mxu0 0.0
  %1046 = vmatprep.subr.mxu0 0.0
  %1047 = vmatpush2.msra.mxu0 0.0
  %1048 = vmatprep.subr.mxu0 0.0
  %1049 = vmatpush2.msra.mxu0 0.0
  %1050 = vmatprep.subr.mxu0 0.0
  %1051 = vmatpush2.msra.mxu0 0.0
  %1052 = vmatprep.subr.mxu0 0.0
  %1053 = vmatpush2.msra.mxu0 0.0
  %1054 = vmatprep.subr.mxu0 0.0
  %1055 = vmatpush2.msra.mxu0 0.0
  %1056 = vmatprep.subr.mxu0 0.0
  %1057 = vmatpush2.msra.mxu0 0.0
  %1058 = vmatprep.subr.mxu0 0.0
  %1059 = vmatpush2.msra.mxu0 0.0
  %1060 = vmatprep.mubr.f32.mxu0 0.0
  %1061 = vmatmul.mubr.f32.gmra.mxu0 %v994
  %v1062 = vpop.f32.mrf.mxu0
  %v1063 = vadd.f32 %v990, %v1062
  %v1064 = vpop.f32.mrf.mxu0
  %1065 = vdwg.mxu0
  %s1066 = scalar_lea.vmem %s15, 16
  %v1067 = vld [vmem:[%s1066] sm:$0xff]
  %1068 = vrot.lane.b32.xlu0 %v908, 124
  %v1069 = vpop.permute.xlu0 %1068
  %v1072 = vsel %vm85, %v1067, 0
  %1074 = vmatprep.subr.mxu0 0.0
  %1075 = vmatpush1.msra.mxu0 0.0
  %1076 = vmatprep.subr.mxu0 0.0
  %1077 = vmatpush1.msra.mxu0 0.0
  %1078 = vmatprep.subr.mxu0 0.0
  %1079 = vmatpush1.msra.mxu0 0.0
  %1080 = vmatprep.subr.mxu0 0.0
  %1081 = vmatpush1.msra.mxu0 0.0
  %1082 = vmatprep.subr.mxu0 0.0
  %1083 = vmatpush1.msra.mxu0 0.0
  %1084 = vmatprep.subr.mxu0 0.0
  %1085 = vmatpush1.msra.mxu0 0.0
  %1086 = vmatprep.subr.mxu0 0.0
  %1087 = vmatpush1.msra.mxu0 0.0
  %1088 = vmatprep.subr.mxu0 0.0
  %1089 = vmatpush1.msra.mxu0 0.0
  %1090 = vmatprep.subr.mxu0 0.0
  %1091 = vmatpush1.msra.mxu0 0.0
  %1092 = vmatprep.subr.mxu0 0.0
  %1093 = vmatpush1.msra.mxu0 0.0
  %1094 = vmatprep.subr.mxu0 0.0
  %1095 = vmatpush1.msra.mxu0 0.0
  %1096 = vmatprep.subr.mxu0 0.0
  %1097 = vmatpush1.msra.mxu0 0.0
  %1098 = vmatprep.subr.mxu0 0.0
  %1099 = vmatpush1.msra.mxu0 0.0
  %1100 = vmatprep.subr.mxu0 0.0
  %1101 = vmatpush1.msra.mxu0 0.0
  %1102 = vmatprep.subr.mxu0 0.0
  %1103 = vmatpush1.msra.mxu0 0.0
  %1104 = vmatprep.subr.mxu0 0.0
  %1105 = vmatpush1.msra.mxu0 %v1069
  %1106 = vmatprep.subr.mxu0 0.0
  %1107 = vmatpush2.msra.mxu0 0.0
  %1108 = vmatprep.subr.mxu0 0.0
  %1109 = vmatpush2.msra.mxu0 0.0
  %1110 = vmatprep.subr.mxu0 0.0
  %1111 = vmatpush2.msra.mxu0 0.0
  %1112 = vmatprep.subr.mxu0 0.0
  %1113 = vmatpush2.msra.mxu0 0.0
  %1114 = vmatprep.subr.mxu0 0.0
  %1115 = vmatpush2.msra.mxu0 0.0
  %1116 = vmatprep.subr.mxu0 0.0
  %1117 = vmatpush2.msra.mxu0 0.0
  %1118 = vmatprep.subr.mxu0 0.0
  %1119 = vmatpush2.msra.mxu0 0.0
  %1120 = vmatprep.subr.mxu0 0.0
  %1121 = vmatpush2.msra.mxu0 0.0
  %1122 = vmatprep.subr.mxu0 0.0
  %1123 = vmatpush2.msra.mxu0 0.0
  %1124 = vmatprep.subr.mxu0 0.0
  %1125 = vmatpush2.msra.mxu0 0.0
  %1126 = vmatprep.subr.mxu0 0.0
  %1127 = vmatpush2.msra.mxu0 0.0
  %1128 = vmatprep.subr.mxu0 0.0
  %1129 = vmatpush2.msra.mxu0 0.0
  %1130 = vmatprep.subr.mxu0 0.0
  %1131 = vmatpush2.msra.mxu0 0.0
  %1132 = vmatprep.subr.mxu0 0.0
  %1133 = vmatpush2.msra.mxu0 0.0
  %1134 = vmatprep.subr.mxu0 0.0
  %1135 = vmatpush2.msra.mxu0 0.0
  %1136 = vmatprep.subr.mxu0 0.0
  %1137 = vmatpush2.msra.mxu0 0.0
  %1138 = vmatprep.mubr.f32.mxu0 0.0
  %1139 = vmatmul.mubr.f32.gmra.mxu0 %v1072
  %v1140 = vpop.f32.mrf.mxu0
  %v1141 = vadd.f32 0.0, %v1140
  %v1142 = vpop.f32.mrf.mxu0
  %1143 = vdwg.mxu0
  %v1144 = vadd.f32 %v1063, %v1141
  %v1145 = vld [vmem:[%s16] sm:$0xff]
  %1147 = vset.pattern.permute.xlu0 0
  %1148 = vperm.xlu0 %1147, %v1145
  %v1149 = vpop.permute.xlu0 %1148
  %v1151 = vadd.f32 %v1144, %v1149
  %v1152 = vld [vmem:[%s17] sm:$0xff]
  %v1153 = vld [vmem:[%s18] sm:$0xff]
  %v1154 = vsel %vm587, %v1151, 0.0
  %1155 = vadd.xlane.f32.xlu0 %v1154
  %v1156 = vpop.xlane.xlu0 %1155
  %v1157 = vmul.f32 %v1156, 0.03125
  %v1158 = vmul.f32 %v1151, %v1151
  %v1159 = vsel %vm587, %v1158, 0.0
  %1160 = vadd.xlane.f32.xlu0 %v1159
  %v1161 = vpop.xlane.xlu0 %1160
  %v1162 = vmul.f32 %v1161, 0.03125
  %v1163 = vmul.f32 %v1157, %v1157
  %v1164 = vsub.f32 %v1162, %v1163
  %v1165 = vsub.f32 %v1151, %v1157
  %v1166 = vadd.f32 %v1164, 1e-05
  %v1167 = vrsqrt.pop %v1166
  %v1168 = vmul.f32 %v1165, %v1167
  %1170 = vset.pattern.permute.xlu0 0
  %1171 = vperm.xlu0 %1170, %v1152
  %v1172 = vpop.permute.xlu0 %1171
  %v1174 = vmul.f32 %v1168, %v1172
  %1176 = vset.pattern.permute.xlu0 0
  %1177 = vperm.xlu0 %1176, %v1153
  %v1178 = vpop.permute.xlu0 %1177
  %v1180 = vadd.f32 %v1174, %v1178
  %vm1181 = vcmp.ge.f32.partialorder %v1180, 0.0
  %v1182 = vmul.f32 %v1180, 0.1
  %v1183 = vsel %vm1181, %v1180, %v1182
  %1185 = vrot.lane.b32.xlu0 %v1183, 4
  %v1186 = vpop.permute.xlu0 %1185
  %1188 = vst.msk [vmem:[#allocation2] sm:$0xff] %vm622, %v1186
  %v1189 = vld [vmem:[%s19] sm:$0xff]
  %v1190 = vld [vmem:[#allocation2] sm:$0xff]
  %v1191 = vsel %vm911, %v1190, 0.0
  %s1192 = scalar_lea.vmem %s19, 8
  %v1193 = vld [vmem:[%s1192] sm:$0xff]
  %1195 = vrot.lane.b32.xlu0 %v1190, 126
  %v1196 = vpop.permute.xlu0 %1195
  %v1198 = vsel %vm331, %v1196, 0.0
  %v1200 = vsel %vm85, %v1193, 0
  %1202 = vmatprep.subr.mxu0 0.0
  %1203 = vmatpush1.msra.mxu0 0.0
  %1204 = vmatprep.subr.mxu0 0.0
  %1205 = vmatpush1.msra.mxu0 0.0
  %1206 = vmatprep.subr.mxu0 0.0
  %1207 = vmatpush1.msra.mxu0 0.0
  %1208 = vmatprep.subr.mxu0 0.0
  %1209 = vmatpush1.msra.mxu0 0.0
  %1210 = vmatprep.subr.mxu0 0.0
  %1211 = vmatpush1.msra.mxu0 0.0
  %1212 = vmatprep.subr.mxu0 0.0
  %1213 = vmatpush1.msra.mxu0 0.0
  %1214 = vmatprep.subr.mxu0 0.0
  %1215 = vmatpush1.msra.mxu0 0.0
  %1216 = vmatprep.subr.mxu0 0.0
  %1217 = vmatpush1.msra.mxu0 0.0
  %1218 = vmatprep.subr.mxu0 0.0
  %1219 = vmatpush1.msra.mxu0 0.0
  %1220 = vmatprep.subr.mxu0 0.0
  %1221 = vmatpush1.msra.mxu0 0.0
  %1222 = vmatprep.subr.mxu0 0.0
  %1223 = vmatpush1.msra.mxu0 0.0
  %1224 = vmatprep.subr.mxu0 0.0
  %1225 = vmatpush1.msra.mxu0 0.0
  %1226 = vmatprep.subr.mxu0 0.0
  %1227 = vmatpush1.msra.mxu0 0.0
  %1228 = vmatprep.subr.mxu0 0.0
  %1229 = vmatpush1.msra.mxu0 0.0
  %1230 = vmatprep.subr.mxu0 0.0
  %1231 = vmatpush1.msra.mxu0 0.0
  %1232 = vmatprep.subr.mxu0 0.0
  %1233 = vmatpush1.msra.mxu0 %v1198
  %1234 = vmatprep.subr.mxu0 0.0
  %1235 = vmatpush2.msra.mxu0 0.0
  %1236 = vmatprep.subr.mxu0 0.0
  %1237 = vmatpush2.msra.mxu0 0.0
  %1238 = vmatprep.subr.mxu0 0.0
  %1239 = vmatpush2.msra.mxu0 0.0
  %1240 = vmatprep.subr.mxu0 0.0
  %1241 = vmatpush2.msra.mxu0 0.0
  %1242 = vmatprep.subr.mxu0 0.0
  %1243 = vmatpush2.msra.mxu0 0.0
  %1244 = vmatprep.subr.mxu0 0.0
  %1245 = vmatpush2.msra.mxu0 0.0
  %1246 = vmatprep.subr.mxu0 0.0
  %1247 = vmatpush2.msra.mxu0 0.0
  %1248 = vmatprep.subr.mxu0 0.0
  %1249 = vmatpush2.msra.mxu0 0.0
  %1250 = vmatprep.subr.mxu0 0.0
  %1251 = vmatpush2.msra.mxu0 0.0
  %1252 = vmatprep.subr.mxu0 0.0
  %1253 = vmatpush2.msra.mxu0 0.0
  %1254 = vmatprep.subr.mxu0 0.0
  %1255 = vmatpush2.msra.mxu0 0.0
  %1256 = vmatprep.subr.mxu0 0.0
  %1257 = vmatpush2.msra.mxu0 0.0
  %1258 = vmatprep.subr.mxu0 0.0
  %1259 = vmatpush2.msra.mxu0 0.0
  %1260 = vmatprep.subr.mxu0 0.0
  %1261 = vmatpush2.msra.mxu0 0.0
  %1262 = vmatprep.subr.mxu0 0.0
  %1263 = vmatpush2.msra.mxu0 0.0
  %1264 = vmatprep.subr.mxu0 0.0
  %1265 = vmatpush2.msra.mxu0 0.0
  %1266 = vmatprep.mubr.f32.mxu0 0.0
  %1267 = vmatmul.mubr.f32.gmra.mxu0 %v1200
  %v1268 = vpop.f32.mrf.mxu0
  %v1269 = vadd.f32 0.0, %v1268
  %v1270 = vpop.f32.mrf.mxu0
  %1271 = vdwg.mxu0
  %v1273 = vsel %vm85, %v1189, 0
  %1275 = vmatprep.subr.mxu0 0.0
  %1276 = vmatpush1.msra.mxu0 0.0
  %1277 = vmatprep.subr.mxu0 0.0
  %1278 = vmatpush1.msra.mxu0 0.0
  %1279 = vmatprep.subr.mxu0 0.0
  %1280 = vmatpush1.msra.mxu0 0.0
  %1281 = vmatprep.subr.mxu0 0.0
  %1282 = vmatpush1.msra.mxu0 0.0
  %1283 = vmatprep.subr.mxu0 0.0
  %1284 = vmatpush1.msra.mxu0 0.0
  %1285 = vmatprep.subr.mxu0 0.0
  %1286 = vmatpush1.msra.mxu0 0.0
  %1287 = vmatprep.subr.mxu0 0.0
  %1288 = vmatpush1.msra.mxu0 0.0
  %1289 = vmatprep.subr.mxu0 0.0
  %1290 = vmatpush1.msra.mxu0 0.0
  %1291 = vmatprep.subr.mxu0 0.0
  %1292 = vmatpush1.msra.mxu0 0.0
  %1293 = vmatprep.subr.mxu0 0.0
  %1294 = vmatpush1.msra.mxu0 0.0
  %1295 = vmatprep.subr.mxu0 0.0
  %1296 = vmatpush1.msra.mxu0 0.0
  %1297 = vmatprep.subr.mxu0 0.0
  %1298 = vmatpush1.msra.mxu0 0.0
  %1299 = vmatprep.subr.mxu0 0.0
  %1300 = vmatpush1.msra.mxu0 0.0
  %1301 = vmatprep.subr.mxu0 0.0
  %1302 = vmatpush1.msra.mxu0 0.0
  %1303 = vmatprep.subr.mxu0 0.0
  %1304 = vmatpush1.msra.mxu0 0.0
  %1305 = vmatprep.subr.mxu0 0.0
  %1306 = vmatpush1.msra.mxu0 %v1191
  %1307 = vmatprep.subr.mxu0 0.0
  %1308 = vmatpush2.msra.mxu0 0.0
  %1309 = vmatprep.subr.mxu0 0.0
  %1310 = vmatpush2.msra.mxu0 0.0
  %1311 = vmatprep.subr.mxu0 0.0
  %1312 = vmatpush2.msra.mxu0 0.0
  %1313 = vmatprep.subr.mxu0 0.0
  %1314 = vmatpush2.msra.mxu0 0.0
  %1315 = vmatprep.subr.mxu0 0.0
  %1316 = vmatpush2.msra.mxu0 0.0
  %1317 = vmatprep.subr.mxu0 0.0
  %1318 = vmatpush2.msra.mxu0 0.0
  %1319 = vmatprep.subr.mxu0 0.0
  %1320 = vmatpush2.msra.mxu0 0.0
  %1321 = vmatprep.subr.mxu0 0.0
  %1322 = vmatpush2.msra.mxu0 0.0
  %1323 = vmatprep.subr.mxu0 0.0
  %1324 = vmatpush2.msra.mxu0 0.0
  %1325 = vmatprep.subr.mxu0 0.0
  %1326 = vmatpush2.msra.mxu0 0.0
  %1327 = vmatprep.subr.mxu0 0.0
  %1328 = vmatpush2.msra.mxu0 0.0
  %1329 = vmatprep.subr.mxu0 0.0
  %1330 = vmatpush2.msra.mxu0 0.0
  %1331 = vmatprep.subr.mxu0 0.0
  %1332 = vmatpush2.msra.mxu0 0.0
  %1333 = vmatprep.subr.mxu0 0.0
  %1334 = vmatpush2.msra.mxu0 0.0
  %1335 = vmatprep.subr.mxu0 0.0
  %1336 = vmatpush2.msra.mxu0 0.0
  %1337 = vmatprep.subr.mxu0 0.0
  %1338 = vmatpush2.msra.mxu0 0.0
  %1339 = vmatprep.mubr.f32.mxu0 0.0
  %1340 = vmatmul.mubr.f32.gmra.mxu0 %v1273
  %v1341 = vpop.f32.mrf.mxu0
  %v1342 = vadd.f32 %v1269, %v1341
  %v1343 = vpop.f32.mrf.mxu0
  %1344 = vdwg.mxu0
  %s1345 = scalar_lea.vmem %s19, 16
  %v1346 = vld [vmem:[%s1345] sm:$0xff]
  %1347 = vrot.lane.b32.xlu0 %v1190, 124
  %v1348 = vpop.permute.xlu0 %1347
  %v1351 = vsel %vm85, %v1346, 0
  %1353 = vmatprep.subr.mxu0 0.0
  %1354 = vmatpush1.msra.mxu0 0.0
  %1355 = vmatprep.subr.mxu0 0.0
  %1356 = vmatpush1.msra.mxu0 0.0
  %1357 = vmatprep.subr.mxu0 0.0
  %1358 = vmatpush1.msra.mxu0 0.0
  %1359 = vmatprep.subr.mxu0 0.0
  %1360 = vmatpush1.msra.mxu0 0.0
  %1361 = vmatprep.subr.mxu0 0.0
  %1362 = vmatpush1.msra.mxu0 0.0
  %1363 = vmatprep.subr.mxu0 0.0
  %1364 = vmatpush1.msra.mxu0 0.0
  %1365 = vmatprep.subr.mxu0 0.0
  %1366 = vmatpush1.msra.mxu0 0.0
  %1367 = vmatprep.subr.mxu0 0.0
  %1368 = vmatpush1.msra.mxu0 0.0
  %1369 = vmatprep.subr.mxu0 0.0
  %1370 = vmatpush1.msra.mxu0 0.0
  %1371 = vmatprep.subr.mxu0 0.0
  %1372 = vmatpush1.msra.mxu0 0.0
  %1373 = vmatprep.subr.mxu0 0.0
  %1374 = vmatpush1.msra.mxu0 0.0
  %1375 = vmatprep.subr.mxu0 0.0
  %1376 = vmatpush1.msra.mxu0 0.0
  %1377 = vmatprep.subr.mxu0 0.0
  %1378 = vmatpush1.msra.mxu0 0.0
  %1379 = vmatprep.subr.mxu0 0.0
  %1380 = vmatpush1.msra.mxu0 0.0
  %1381 = vmatprep.subr.mxu0 0.0
  %1382 = vmatpush1.msra.mxu0 0.0
  %1383 = vmatprep.subr.mxu0 0.0
  %1384 = vmatpush1.msra.mxu0 %v1348
  %1385 = vmatprep.subr.mxu0 0.0
  %1386 = vmatpush2.msra.mxu0 0.0
  %1387 = vmatprep.subr.mxu0 0.0
  %1388 = vmatpush2.msra.mxu0 0.0
  %1389 = vmatprep.subr.mxu0 0.0
  %1390 = vmatpush2.msra.mxu0 0.0
  %1391 = vmatprep.subr.mxu0 0.0
  %1392 = vmatpush2.msra.mxu0 0.0
  %1393 = vmatprep.subr.mxu0 0.0
  %1394 = vmatpush2.msra.mxu0 0.0
  %1395 = vmatprep.subr.mxu0 0.0
  %1396 = vmatpush2.msra.mxu0 0.0
  %1397 = vmatprep.subr.mxu0 0.0
  %1398 = vmatpush2.msra.mxu0 0.0
  %1399 = vmatprep.subr.mxu0 0.0
  %1400 = vmatpush2.msra.mxu0 0.0
  %1401 = vmatprep.subr.mxu0 0.0
  %1402 = vmatpush2.msra.mxu0 0.0
  %1403 = vmatprep.subr.mxu0 0.0
  %1404 = vmatpush2.msra.mxu0 0.0
  %1405 = vmatprep.subr.mxu0 0.0
  %1406 = vmatpush2.msra.mxu0 0.0
  %1407 = vmatprep.subr.mxu0 0.0
  %1408 = vmatpush2.msra.mxu0 0.0
  %1409 = vmatprep.subr.mxu0 0.0
  %1410 = vmatpush2.msra.mxu0 0.0
  %1411 = vmatprep.subr.mxu0 0.0
  %1412 = vmatpush2.msra.mxu0 0.0
  %1413 = vmatprep.subr.mxu0 0.0
  %1414 = vmatpush2.msra.mxu0 0.0
  %1415 = vmatprep.subr.mxu0 0.0
  %1416 = vmatpush2.msra.mxu0 0.0
  %1417 = vmatprep.mubr.f32.mxu0 0.0
  %1418 = vmatmul.mubr.f32.gmra.mxu0 %v1351
  %v1419 = vpop.f32.mrf.mxu0
  %v1420 = vadd.f32 0.0, %v1419
  %v1421 = vpop.f32.mrf.mxu0
  %1422 = vdwg.mxu0
  %v1423 = vadd.f32 %v1342, %v1420
  %v1424 = vld [vmem:[%s20] sm:$0xff]
  %1426 = vset.pattern.permute.xlu0 0
  %1427 = vperm.xlu0 %1426, %v1424
  %v1428 = vpop.permute.xlu0 %1427
  %v1430 = vadd.f32 %v1423, %v1428
  %v1431 = vadd.f32 %v1430, %v869
  %v1432 = vld [vmem:[%s21] sm:$0x7]
  %v1433 = vld [vmem:[%s22] sm:$0x7]
  %1435 = vset.pattern.permute.xlu0 0
  %1436 = vperm.xlu0 %1435, %v1433
  %v1437 = vpop.permute.xlu0 %1436
  %v1440 = vsel %vm85, %v1432, 0
  %1442 = vmatprep.subr.mxu0 0.0
  %1443 = vmatpush1.msra.mxu0 0.0
  %1444 = vmatprep.subr.mxu0 0.0
  %1445 = vmatpush1.msra.mxu0 0.0
  %1446 = vmatprep.subr.mxu0 0.0
  %1447 = vmatpush1.msra.mxu0 0.0
  %1448 = vmatprep.subr.mxu0 0.0
  %1449 = vmatpush1.msra.mxu0 0.0
  %1450 = vmatprep.subr.mxu0 0.0
  %1451 = vmatpush1.msra.mxu0 0.0
  %1452 = vmatprep.subr.mxu0 0.0
  %1453 = vmatpush1.msra.mxu0 0.0
  %1454 = vmatprep.subr.mxu0 0.0
  %1455 = vmatpush1.msra.mxu0 0.0
  %1456 = vmatprep.subr.mxu0 0.0
  %1457 = vmatpush1.msra.mxu0 0.0
  %1458 = vmatprep.subr.mxu0 0.0
  %1459 = vmatpush1.msra.mxu0 0.0
  %1460 = vmatprep.subr.mxu0 0.0
  %1461 = vmatpush1.msra.mxu0 0.0
  %1462 = vmatprep.subr.mxu0 0.0
  %1463 = vmatpush1.msra.mxu0 0.0
  %1464 = vmatprep.subr.mxu0 0.0
  %1465 = vmatpush1.msra.mxu0 0.0
  %1466 = vmatprep.subr.mxu0 0.0
  %1467 = vmatpush1.msra.mxu0 0.0
  %1468 = vmatprep.subr.mxu0 0.0
  %1469 = vmatpush1.msra.mxu0 0.0
  %1470 = vmatprep.subr.mxu0 0.0
  %1471 = vmatpush1.msra.mxu0 0.0
  %1472 = vmatprep.subr.mxu0 0.0
  %1473 = vmatpush1.msra.mxu0 %v1431
  %1474 = vmatprep.subr.mxu0 0.0
  %1475 = vmatpush2.msra.mxu0 0.0
  %1476 = vmatprep.subr.mxu0 0.0
  %1477 = vmatpush2.msra.mxu0 0.0
  %1478 = vmatprep.subr.mxu0 0.0
  %1479 = vmatpush2.msra.mxu0 0.0
  %1480 = vmatprep.subr.mxu0 0.0
  %1481 = vmatpush2.msra.mxu0 0.0
  %1482 = vmatprep.subr.mxu0 0.0
  %1483 = vmatpush2.msra.mxu0 0.0
  %1484 = vmatprep.subr.mxu0 0.0
  %1485 = vmatpush2.msra.mxu0 0.0
  %1486 = vmatprep.subr.mxu0 0.0
  %1487 = vmatpush2.msra.mxu0 0.0
  %1488 = vmatprep.subr.mxu0 0.0
  %1489 = vmatpush2.msra.mxu0 0.0
  %1490 = vmatprep.subr.mxu0 0.0
  %1491 = vmatpush2.msra.mxu0 0.0
  %1492 = vmatprep.subr.mxu0 0.0
  %1493 = vmatpush2.msra.mxu0 0.0
  %1494 = vmatprep.subr.mxu0 0.0
  %1495 = vmatpush2.msra.mxu0 0.0
  %1496 = vmatprep.subr.mxu0 0.0
  %1497 = vmatpush2.msra.mxu0 0.0
  %1498 = vmatprep.subr.mxu0 0.0
  %1499 = vmatpush2.msra.mxu0 0.0
  %1500 = vmatprep.subr.mxu0 0.0
  %1501 = vmatpush2.msra.mxu0 0.0
  %1502 = vmatprep.subr.mxu0 0.0
  %1503 = vmatpush2.msra.mxu0 0.0
  %1504 = vmatprep.subr.mxu0 0.0
  %1505 = vmatpush2.msra.mxu0 0.0
  %1506 = vmatprep.mubr.f32.mxu0 0.0
  %1507 = vmatmul.mubr.f32.gmra.mxu0 %v1440
  %v1508 = vpop.f32.mrf.mxu0
  %v1509 = vadd.f32 %v1437, %v1508
  %v1510 = vpop.f32.mrf.mxu0
  %1511 = vdwg.mxu0
  %v1512 = vtanh.pop %v1509
  %vm1513 = vcmask 124928
  %1514 = vst.msk [vmem:[%s23] sm:$0x7] %vm1513, %v1512
  %1516 = vrot.lane.b32.xlu0 %v1512, 112
  %v1517 = vpop.permute.xlu0 %1516
  %s1519 = scalar_lea.vmem %s23, 4
  %1520 = vst.msk [vmem:[%s1519] sm:$0x7] %vm1513, %v1517
  // Predicated region
  $region94: #{tpu_custom_call.1} parent=0 // pred_check
    _
  $region95: #{tpu_custom_call.1} parent=0 // pred_check_branch
    %1522 = sbr.rel (0) target = $region97
  $region96: #{tpu_custom_call.1} parent=0 // pred_region
    _
  $region97: #{tpu_custom_call.1} parent=0 // pred_fallthru
    _
  // Predicated region
  $region98: #{tpu_custom_call.1} parent=0 // pred_check
    _
  $region99: #{tpu_custom_call.1} parent=0 // pred_check_branch
    %1524 = sbr.rel (0) target = $region101
  $region100: #{tpu_custom_call.1} parent=0 // pred_region
    _
  $region101: #{tpu_custom_call.1} parent=0 // pred_fallthru
    _

</llo_original>
